<compile_context>
chip_gen: v6e
topology: v6e:2x2x1
jax: 0.10.0
libtpu: 0.0.40
codegen_flags: <defaults>
</compile_context>

<pallas_src>
import functools

import jax
import jax.numpy as jnp
from jax import lax
from jax.experimental import pallas as pl
from jax.experimental.pallas import tpu as pltpu

OP_MAXPOOL, OP_AVGPOOL, OP_IDENTITY = 0, 1, 2


# ---------------- calibrate kernel (ReLU-Conv1x1-BN + layout fold) -----------

def _calibrate_kernel(x_ref, e_ref, b_ref, o_ref, *, cin, apply_relu):
    """NCHW block in -> lane-dense (H, W*Cout) out.

    e[ci] has shape (W, W*Cout) with e[ci][w, w*Cout + co] = w_folded[ci, co]
    (block-diagonal expansion), so the matmul performs the 1x1 channel mix and
    the NCHW -> lane-dense layout change in one shot, with a lane-dense
    (no masked-store) output.
    """
    _, h, wcout = o_ref.shape
    acc = jnp.zeros((h, wcout), jnp.float32)
    for ci in range(cin):
        xi = x_ref[0, ci]                                   # (H, W)
        if apply_relu:
            xi = jnp.maximum(xi, 0.0)
        acc = acc + jnp.dot(xi, e_ref[ci],
                            preferred_element_type=jnp.float32)
    o_ref[0] = acc + b_ref[...]


def calibrate_to_lanedense(x_nchw, e, bias_lane, *, apply_relu):
    n, cin, h, w = x_nchw.shape
    wcout = e.shape[-1]
    return pl.pallas_call(
        functools.partial(_calibrate_kernel, cin=cin, apply_relu=apply_relu),
        out_shape=jax.ShapeDtypeStruct((n, h, wcout), jnp.float32),
        grid=(n,),
        in_specs=[
            pl.BlockSpec((1, cin, h, w), lambda i: (i, 0, 0, 0)),
            pl.BlockSpec((cin, w, wcout), lambda i: (0, 0, 0)),
            pl.BlockSpec((1, wcout), lambda i: (0, 0)),
        ],
        out_specs=pl.BlockSpec((1, h, wcout), lambda i: (i, 0, 0)),
        compiler_params=pltpu.CompilerParams(
            dimension_semantics=("parallel",)),
    )(x_nchw, e, bias_lane.reshape(1, wcout))


# ---------------------- fused node kernel (op + op + add) --------------------

def _inv_count_map(h, w, c, shape):
    """Exact 1/valid_count map for 3x3 avg pool with count_include_pad=False."""
    hi = lax.broadcasted_iota(jnp.int32, shape, 0)
    li = lax.broadcasted_iota(jnp.int32, shape, 1)          # lane = w*C + c
    cnt_h = 3 - (hi == 0).astype(jnp.int32) - (hi == h - 1).astype(jnp.int32)
    cnt_w = (3 - (li < c).astype(jnp.int32)
             - (li >= (w - 1) * c).astype(jnp.int32))
    inv_h = jnp.where(cnt_h == 3, 1.0 / 3.0, jnp.where(cnt_h == 2, 0.5, 1.0))
    inv_w = jnp.where(cnt_w == 3, 1.0 / 3.0, jnp.where(cnt_w == 2, 0.5, 1.0))
    return inv_h * inv_w


def _pool3x3_s1(x, *, is_max, h, w, c, inv):
    """3x3, stride-1, pad-1 pool on a lane-dense (H, W*C) tile, in registers.

    Window shifts are pltpu.roll (XLU slot) + iota edge masks (VPU slot); no
    padded VMEM scratch and no misaligned slice reloads.
    """
    pad = -jnp.inf if is_max else 0.0
    hi = lax.broadcasted_iota(jnp.int32, x.shape, 0)
    li = lax.broadcasted_iota(jnp.int32, x.shape, 1)
    wc = w * c
    acc = None
    for dy in (-1, 0, 1):
        for dx in (-1, 0, 1):
            v = x
            if dy != 0:
                v = pltpu.roll(v, (-dy) % h, 0)         # H shift (sublane)
            if dx != 0:
                v = pltpu.roll(v, (-dx * c) % wc, 1)    # W shift = C lanes
            mask = None
            if dy == -1:
                mask = hi >= 1
            elif dy == 1:
                mask = hi < h - 1
            if dx == -1:
                m = li >= c                              # w >= 1
                mask = m if mask is None else (mask & m)
            elif dx == 1:
                m = li < (w - 1) * c                     # w <= W-2
                mask = m if mask is None else (mask & m)
            if mask is not None:
                v = jnp.where(mask, v, pad)
            if acc is None:
                acc = v
            elif is_max:
                acc = jnp.maximum(acc, v)
            else:
                acc = acc + v
    return acc if is_max else acc * inv


def _apply_op(x, op, h, w, c, inv):
    if op == OP_MAXPOOL:
        return _pool3x3_s1(x, is_max=True, h=h, w=w, c=c, inv=None)
    if op == OP_AVGPOOL:
        return _pool3x3_s1(x, is_max=False, h=h, w=w, c=c, inv=inv)
    return x  # identity


def _node_kernel(x_ref, y_ref, o_ref, *, x_op, y_op, h, w, c):
    """Fused Node: op_x(x) + op_y(y) in a single launch on lane-dense tiles."""
    inv = None
    if OP_AVGPOOL in (x_op, y_op):
        inv = _inv_count_map(h, w, c, (h, w * c))        # hoisted, built once
    xv = _apply_op(x_ref[0], x_op, h, w, c, inv)
    yv = _apply_op(y_ref[0], y_op, h, w, c, inv)
    o_ref[0] = xv + yv


def node_fused(x, y, x_op, y_op, *, h, w, c):
    n = x.shape[0]
    wc = w * c
    return pl.pallas_call(
        functools.partial(_node_kernel, x_op=x_op, y_op=y_op, h=h, w=w, c=c),
        out_shape=jax.ShapeDtypeStruct((n, h, wc), jnp.float32),
        grid=(n,),
        in_specs=[pl.BlockSpec((1, h, wc), lambda i: (i, 0, 0)),
                  pl.BlockSpec((1, h, wc), lambda i: (i, 0, 0))],
        out_specs=pl.BlockSpec((1, h, wc), lambda i: (i, 0, 0)),
        compiler_params=pltpu.CompilerParams(
            dimension_semantics=("parallel",)),
    )(x, y)


# ----------------------------- parameter builders ----------------------------

def _expand_conv_weight(w_folded, width):
    """(Cin, Cout) -> (Cin, W, W*Cout) block-diagonal expansion (host-side)."""
    cin, cout = w_folded.shape
    eye = jnp.eye(width, dtype=jnp.float32)
    e = eye[None, :, :, None] * w_folded[:, None, None, :]
    return e.reshape(cin, width, width * cout)


def _calibrate_params(cin, cout, width, key):
    """Deterministic 1x1 conv + eval BatchNorm; BN scale folded into weight."""
    kw, kg, kb, km = jax.random.split(key, 4)
    w = jax.random.normal(kw, (cin, cout), jnp.float32) * 0.1
    gamma = 1.0 + 0.1 * jax.random.normal(kg, (cout,), jnp.float32)
    beta = 0.1 * jax.random.normal(kb, (cout,), jnp.float32)
    rmean = 0.1 * jax.random.normal(km, (cout,), jnp.float32)
    rvar = jnp.ones((cout,), jnp.float32)
    scale = gamma / jnp.sqrt(rvar + 1e-5)
    w_folded = w * scale[None, :]                 # fold BN scale into weight
    bias = beta - rmean * scale
    return _expand_conv_weight(w_folded, width), jnp.tile(bias, width), True


def _identity_layout_params(c, width):
    """Pass-through (no ReLU/conv/BN); still folds NCHW -> lane-dense layout."""
    eye_c = jnp.eye(c, dtype=jnp.float32)
    return (_expand_conv_weight(eye_c, width),
            jnp.zeros((width * c,), jnp.float32), False)


# --------------------------- Cell (wrapper / glue) ---------------------------

class CellPallas:
    """Eval-mode forward of the PyTorch `Cell` (normal cell, ops {0,1,2})."""

    def __init__(self, arch, prev_layers, channels, reduction, layer_id,
                 layers, steps, drop_path_keep_prob=None, *, key):
        assert len(prev_layers) == 2
        assert not reduction  # TODO(synk): reduction cells not implemented
        self.arch = arch
        self.channels = channels
        self.drop_path_keep_prob = drop_path_keep_prob  # unused in eval mode
        self.nodes = len(arch) // 4
        self.used = [0] * (self.nodes + 2)

        prev_layers = [list(prev_layers[0]), list(prev_layers[1])]
        hw = [prev_layers[0][0], prev_layers[1][0]]
        c = [prev_layers[0][-1], prev_layers[1][-1]]
        # TODO(synk): FactorizedReduce path of MaybeCalibrateSize (hw mismatch)
        assert hw[0] == hw[1]
        self.h = prev_layers[0][0]
        self.w = prev_layers[0][1]

        keys = jax.random.split(key, 2)
        self.pre = []
        for i in range(2):
            if c[i] != channels:
                self.pre.append(
                    _calibrate_params(c[i], channels, self.w, keys[i]))
            else:
                self.pre.append(_identity_layout_params(channels, self.w))

        layers_hw = [hw[0], hw[1]]
        self.node_cfg = []
        for i in range(self.nodes):
            x_id, x_op = arch[2 * i][0], arch[2 * i][1]
            y_id, y_op = arch[2 * i + 1][0], arch[2 * i + 1][1]
            assert x_op in (0, 1, 2) and y_op in (0, 1, 2)  # TODO(synk): ops 3-6
            self.node_cfg.append((x_id, x_op, y_id, y_op))
            self.used[x_id] += 1
            self.used[y_id] += 1
            layers_hw.append(hw[0])

        self.concat = [i for i in range(self.nodes + 2) if self.used[i] == 0]
        out_hw = min(layers_hw[i] for i in self.concat)
        self.out_shape = [out_hw, out_hw, channels * len(self.concat)]

    def __call__(self, s0, s1, step=0):
        s0 = s0.astype(jnp.float32)
        s1 = s1.astype(jnp.float32)
        # MaybeCalibrateSize fused with the NCHW -> lane-dense layout change.
        states = [
            calibrate_to_lanedense(s0, self.pre[0][0], self.pre[0][1],
                                   apply_relu=self.pre[0][2]),
            calibrate_to_lanedense(s1, self.pre[1][0], self.pre[1][1],
                                   apply_relu=self.pre[1][2]),
        ]
        for (x_id, x_op, y_id, y_op) in self.node_cfg:
            states.append(node_fused(states[x_id], states[y_id], x_op, y_op,
                                     h=self.h, w=self.w, c=self.channels))
        # FinalCombine: channel concat (NHWC last axis == NCHW dim=1), NCHW out.
        # TODO(synk): fuse this exit layout conversion into a Pallas kernel.
        n = s0.shape[0]
        nhwc = [states[i].reshape(n, self.h, self.w, self.channels)
                for i in self.concat]
        out = jnp.concatenate(nhwc, axis=-1)
        return jnp.transpose(out, (0, 3, 1, 2))


# --------------------------------- main --------------------------------------

if __name__ == "__main__":
    key = jax.random.PRNGKey(0)
    k0, k1, kp = jax.random.split(key, 3)

    N, H, W = 2, 16, 16
    C_prev0, C_prev1, channels = 4, 4, 8

    s0 = jax.random.normal(k0, (N, C_prev0, H, W), jnp.float32)
    s1 = jax.random.normal(k1, (N, C_prev1, H, W), jnp.float32)

    # arch is a list of (id, op) pairs; nodes = len(arch)//4 (only the first
    # 2*nodes entries are read, matching the reference code).
    arch = [(0, 2), (1, 0),   # node0: identity(s0) + maxpool3x3(s1)
            (1, 1), (0, 2),   # node1: avgpool3x3(s1) + identity(s0)
            (0, 0), (0, 0), (0, 0), (0, 0)]  # padding entries (unused)

    cell = CellPallas(arch, [[H, W, C_prev0], [H, W, C_prev1]], channels,
                      reduction=False, layer_id=0, layers=1, steps=1,
                      drop_path_keep_prob=None, key=kp)

    fwd = jax.jit(lambda a, b: cell(a, b, 0))
    out = jax.block_until_ready(fwd(s0, s1))

    expected = (N, channels * len(cell.concat), H, W)
    assert out.shape == expected, (out.shape, expected)
    assert bool(jnp.all(jnp.isfinite(out)))
    print("KERNEL_OK")
</pallas_src>

<mosaic_0001>
module attributes {stable_mosaic.version = 11 : i64} {
  func.func @_node_kernel(%arg0: i32, %arg1: memref<1x16x128xf32, #tpu.memory_space<vmem>>, %arg2: memref<1x16x128xf32, #tpu.memory_space<vmem>>, %arg3: memref<1x16x128xf32, #tpu.memory_space<vmem>>) attributes {dimension_semantics = [#tpu.dimension_semantics<parallel>], iteration_bounds = array<i64: 2>, scalar_prefetch = 0 : i64, scratch_operands = 0 : i64, tpu.core_type = #tpu.core_type<tc>, window_params = [{transform_indices = @transform_0, window_bounds = array<i64: 1, 16, 128>}, {transform_indices = @transform_1, window_bounds = array<i64: 1, 16, 128>}, {transform_indices = @transform_2, window_bounds = array<i64: 1, 16, 128>}]} {
    %c0 = arith.constant 0 : index
    %c0_0 = arith.constant 0 : index
    %c0_1 = arith.constant 0 : index
    %0 = vector.load %arg1[%c0, %c0_0, %c0_1] : memref<1x16x128xf32, #tpu.memory_space<vmem>>, vector<1x16x128xf32>
    %1 = vector.shape_cast %0 : vector<1x16x128xf32> to vector<16x128xf32>
    %c0_2 = arith.constant 0 : index
    %c0_3 = arith.constant 0 : index
    %c0_4 = arith.constant 0 : index
    %2 = vector.load %arg2[%c0_2, %c0_3, %c0_4] : memref<1x16x128xf32, #tpu.memory_space<vmem>>, vector<1x16x128xf32>
    %3 = vector.shape_cast %2 : vector<1x16x128xf32> to vector<16x128xf32>
    %4 = tpu.iota {dimensions = array<i32: 0>} : vector<16x128xi32>
    %5 = tpu.iota {dimensions = array<i32: 1>} : vector<16x128xi32>
    %c1_i32 = arith.constant 1 : i32
    %6 = tpu.dynamic_rotate %3 by %c1_i32 dim 0 : vector<16x128xf32>, i32 -> vector<16x128xf32>
    %c8_i32 = arith.constant 8 : i32
    %7 = tpu.dynamic_rotate %6 by %c8_i32 dim 1 : vector<16x128xf32>, i32 -> vector<16x128xf32>
    %c1_i32_5 = arith.constant 1 : i32
    %8 = vector.broadcast %c1_i32_5 : i32 to vector<16x128xi32>
    %9 = arith.cmpi sge, %4, %8 : vector<16x128xi32>
    %c8_i32_6 = arith.constant 8 : i32
    %10 = vector.broadcast %c8_i32_6 : i32 to vector<16x128xi32>
    %11 = arith.cmpi sge, %5, %10 : vector<16x128xi32>
    %12 = arith.andi %9, %11 : vector<16x128xi1>
    %cst = arith.constant 0xFF800000 : f32
    %13 = vector.broadcast %cst : f32 to vector<16x128xf32>
    %14 = arith.select %12, %7, %13 : vector<16x128xi1>, vector<16x128xf32>
    %c1_i32_7 = arith.constant 1 : i32
    %15 = tpu.dynamic_rotate %3 by %c1_i32_7 dim 0 : vector<16x128xf32>, i32 -> vector<16x128xf32>
    %c1_i32_8 = arith.constant 1 : i32
    %16 = vector.broadcast %c1_i32_8 : i32 to vector<16x128xi32>
    %17 = arith.cmpi sge, %4, %16 : vector<16x128xi32>
    %cst_9 = arith.constant 0xFF800000 : f32
    %18 = vector.broadcast %cst_9 : f32 to vector<16x128xf32>
    %19 = arith.select %17, %15, %18 : vector<16x128xi1>, vector<16x128xf32>
    %20 = arith.maximumf %14, %19 : vector<16x128xf32>
    %c1_i32_10 = arith.constant 1 : i32
    %21 = tpu.dynamic_rotate %3 by %c1_i32_10 dim 0 : vector<16x128xf32>, i32 -> vector<16x128xf32>
    %c120_i32 = arith.constant 120 : i32
    %22 = tpu.dynamic_rotate %21 by %c120_i32 dim 1 : vector<16x128xf32>, i32 -> vector<16x128xf32>
    %c1_i32_11 = arith.constant 1 : i32
    %23 = vector.broadcast %c1_i32_11 : i32 to vector<16x128xi32>
    %24 = arith.cmpi sge, %4, %23 : vector<16x128xi32>
    %c120_i32_12 = arith.constant 120 : i32
    %25 = vector.broadcast %c120_i32_12 : i32 to vector<16x128xi32>
    %26 = arith.cmpi slt, %5, %25 : vector<16x128xi32>
    %27 = arith.andi %24, %26 : vector<16x128xi1>
    %cst_13 = arith.constant 0xFF800000 : f32
    %28 = vector.broadcast %cst_13 : f32 to vector<16x128xf32>
    %29 = arith.select %27, %22, %28 : vector<16x128xi1>, vector<16x128xf32>
    %30 = arith.maximumf %20, %29 : vector<16x128xf32>
    %c8_i32_14 = arith.constant 8 : i32
    %31 = tpu.dynamic_rotate %3 by %c8_i32_14 dim 1 : vector<16x128xf32>, i32 -> vector<16x128xf32>
    %c8_i32_15 = arith.constant 8 : i32
    %32 = vector.broadcast %c8_i32_15 : i32 to vector<16x128xi32>
    %33 = arith.cmpi sge, %5, %32 : vector<16x128xi32>
    %cst_16 = arith.constant 0xFF800000 : f32
    %34 = vector.broadcast %cst_16 : f32 to vector<16x128xf32>
    %35 = arith.select %33, %31, %34 : vector<16x128xi1>, vector<16x128xf32>
    %36 = arith.maximumf %30, %35 : vector<16x128xf32>
    %37 = arith.maximumf %36, %3 : vector<16x128xf32>
    %c120_i32_17 = arith.constant 120 : i32
    %38 = tpu.dynamic_rotate %3 by %c120_i32_17 dim 1 : vector<16x128xf32>, i32 -> vector<16x128xf32>
    %c120_i32_18 = arith.constant 120 : i32
    %39 = vector.broadcast %c120_i32_18 : i32 to vector<16x128xi32>
    %40 = arith.cmpi slt, %5, %39 : vector<16x128xi32>
    %cst_19 = arith.constant 0xFF800000 : f32
    %41 = vector.broadcast %cst_19 : f32 to vector<16x128xf32>
    %42 = arith.select %40, %38, %41 : vector<16x128xi1>, vector<16x128xf32>
    %43 = arith.maximumf %37, %42 : vector<16x128xf32>
    %c15_i32 = arith.constant 15 : i32
    %44 = tpu.dynamic_rotate %3 by %c15_i32 dim 0 : vector<16x128xf32>, i32 -> vector<16x128xf32>
    %c8_i32_20 = arith.constant 8 : i32
    %45 = tpu.dynamic_rotate %44 by %c8_i32_20 dim 1 : vector<16x128xf32>, i32 -> vector<16x128xf32>
    %c15_i32_21 = arith.constant 15 : i32
    %46 = vector.broadcast %c15_i32_21 : i32 to vector<16x128xi32>
    %47 = arith.cmpi slt, %4, %46 : vector<16x128xi32>
    %c8_i32_22 = arith.constant 8 : i32
    %48 = vector.broadcast %c8_i32_22 : i32 to vector<16x128xi32>
    %49 = arith.cmpi sge, %5, %48 : vector<16x128xi32>
    %50 = arith.andi %47, %49 : vector<16x128xi1>
    %cst_23 = arith.constant 0xFF800000 : f32
    %51 = vector.broadcast %cst_23 : f32 to vector<16x128xf32>
    %52 = arith.select %50, %45, %51 : vector<16x128xi1>, vector<16x128xf32>
    %53 = arith.maximumf %43, %52 : vector<16x128xf32>
    %c15_i32_24 = arith.constant 15 : i32
    %54 = tpu.dynamic_rotate %3 by %c15_i32_24 dim 0 : vector<16x128xf32>, i32 -> vector<16x128xf32>
    %c15_i32_25 = arith.constant 15 : i32
    %55 = vector.broadcast %c15_i32_25 : i32 to vector<16x128xi32>
    %56 = arith.cmpi slt, %4, %55 : vector<16x128xi32>
    %cst_26 = arith.constant 0xFF800000 : f32
    %57 = vector.broadcast %cst_26 : f32 to vector<16x128xf32>
    %58 = arith.select %56, %54, %57 : vector<16x128xi1>, vector<16x128xf32>
    %59 = arith.maximumf %53, %58 : vector<16x128xf32>
    %c15_i32_27 = arith.constant 15 : i32
    %60 = tpu.dynamic_rotate %3 by %c15_i32_27 dim 0 : vector<16x128xf32>, i32 -> vector<16x128xf32>
    %c120_i32_28 = arith.constant 120 : i32
    %61 = tpu.dynamic_rotate %60 by %c120_i32_28 dim 1 : vector<16x128xf32>, i32 -> vector<16x128xf32>
    %c15_i32_29 = arith.constant 15 : i32
    %62 = vector.broadcast %c15_i32_29 : i32 to vector<16x128xi32>
    %63 = arith.cmpi slt, %4, %62 : vector<16x128xi32>
    %c120_i32_30 = arith.constant 120 : i32
    %64 = vector.broadcast %c120_i32_30 : i32 to vector<16x128xi32>
    %65 = arith.cmpi slt, %5, %64 : vector<16x128xi32>
    %66 = arith.andi %63, %65 : vector<16x128xi1>
    %cst_31 = arith.constant 0xFF800000 : f32
    %67 = vector.broadcast %cst_31 : f32 to vector<16x128xf32>
    %68 = arith.select %66, %61, %67 : vector<16x128xi1>, vector<16x128xf32>
    %69 = arith.maximumf %59, %68 : vector<16x128xf32>
    %70 = arith.addf %1, %69 : vector<16x128xf32>
    %c0_32 = arith.constant 0 : index
    %c0_33 = arith.constant 0 : index
    %c0_34 = arith.constant 0 : index
    %71 = vector.load %arg3[%c0_32, %c0_33, %c0_34] : memref<1x16x128xf32, #tpu.memory_space<vmem>>, vector<1x16x128xf32>
    %72 = vector.shape_cast %71 : vector<1x16x128xf32> to vector<16x128xf32>
    %73 = vector.shape_cast %70 : vector<16x128xf32> to vector<1x16x128xf32>
    tpu.vector_store %arg3[%c0_32, %c0_33, %c0_34], %73 {strides = array<i32>} : memref<1x16x128xf32, #tpu.memory_space<vmem>>, vector<1x16x128xf32>,
    return
  }
  func.func @transform_0(%arg0: i32) -> (i32, i32, i32) {
    %c0_i32 = arith.constant 0 : i32
    %c0_i32_0 = arith.constant 0 : i32
    %c0_i32_1 = arith.constant 0 : i32
    return %arg0, %c0_i32, %c0_i32_0 : i32, i32, i32
  }
  func.func @transform_1(%arg0: i32) -> (i32, i32, i32) {
    %c0_i32 = arith.constant 0 : i32
    %c0_i32_0 = arith.constant 0 : i32
    %c0_i32_1 = arith.constant 0 : i32
    return %arg0, %c0_i32, %c0_i32_0 : i32, i32, i32
  }
  func.func @transform_2(%arg0: i32) -> (i32, i32, i32) {
    %c0_i32 = arith.constant 0 : i32
    %c0_i32_0 = arith.constant 0 : i32
    %c0_i32_1 = arith.constant 0 : i32
    return %arg0, %c0_i32, %c0_i32_0 : i32, i32, i32
  }
}

module attributes {stable_mosaic.version = 11 : i64} {
  func.func @_calibrate_kernel(%arg0: i32, %arg1: memref<1x4x16x16xf32, #tpu.memory_space<vmem>>, %arg2: memref<4x16x128xf32, #tpu.memory_space<vmem>>, %arg3: memref<1x128xf32, #tpu.memory_space<vmem>>, %arg4: memref<1x16x128xf32, #tpu.memory_space<vmem>>) attributes {dimension_semantics = [#tpu.dimension_semantics<parallel>], iteration_bounds = array<i64: 2>, scalar_prefetch = 0 : i64, scratch_operands = 0 : i64, tpu.core_type = #tpu.core_type<tc>, window_params = [{transform_indices = @transform_0, window_bounds = array<i64: 1, 4, 16, 16>}, {pipeline_mode = #tpu.pipeline_mode<synchronous>, transform_indices = @transform_1, window_bounds = array<i64: 4, 16, 128>}, {pipeline_mode = #tpu.pipeline_mode<synchronous>, transform_indices = @transform_2, window_bounds = array<i64: 1, 128>}, {transform_indices = @transform_3, window_bounds = array<i64: 1, 16, 128>}]} {
    %cst = arith.constant 0.000000e+00 : f32
    %0 = vector.broadcast %cst : f32 to vector<16x128xf32>
    %c0 = arith.constant 0 : index
    %c0_0 = arith.constant 0 : index
    %c0_1 = arith.constant 0 : index
    %c0_2 = arith.constant 0 : index
    %1 = vector.load %arg1[%c0, %c0_0, %c0_1, %c0_2] : memref<1x4x16x16xf32, #tpu.memory_space<vmem>>, vector<1x1x16x16xf32>
    %2 = vector.shape_cast %1 : vector<1x1x16x16xf32> to vector<16x16xf32>
    %cst_3 = arith.constant 0.000000e+00 : f32
    %3 = vector.broadcast %cst_3 : f32 to vector<16x16xf32>
    %4 = arith.maximumf %2, %3 : vector<16x16xf32>
    %c0_4 = arith.constant 0 : index
    %c0_5 = arith.constant 0 : index
    %c0_6 = arith.constant 0 : index
    %5 = vector.load %arg2[%c0_4, %c0_5, %c0_6] : memref<4x16x128xf32, #tpu.memory_space<vmem>>, vector<1x16x128xf32>
    %6 = vector.shape_cast %5 : vector<1x16x128xf32> to vector<16x128xf32>
    %cst_7 = arith.constant dense<0.000000e+00> : vector<16x128xf32>
    %7 = tpu.matmul %4, %6, %cst_7 {dimension_numbers = #tpu.dot_dimension_numbers<[1], [0], [0], [1], [0, 0, 1, 1], [], []>} : vector<16x16xf32>, vector<16x128xf32>, vector<16x128xf32> -> vector<16x128xf32>
    %8 = arith.addf %0, %7 : vector<16x128xf32>
    %c0_8 = arith.constant 0 : index
    %c1 = arith.constant 1 : index
    %c0_9 = arith.constant 0 : index
    %c0_10 = arith.constant 0 : index
    %9 = vector.load %arg1[%c0_8, %c1, %c0_9, %c0_10] : memref<1x4x16x16xf32, #tpu.memory_space<vmem>>, vector<1x1x16x16xf32>
    %10 = vector.shape_cast %9 : vector<1x1x16x16xf32> to vector<16x16xf32>
    %cst_11 = arith.constant 0.000000e+00 : f32
    %11 = vector.broadcast %cst_11 : f32 to vector<16x16xf32>
    %12 = arith.maximumf %10, %11 : vector<16x16xf32>
    %c1_12 = arith.constant 1 : index
    %c0_13 = arith.constant 0 : index
    %c0_14 = arith.constant 0 : index
    %13 = vector.load %arg2[%c1_12, %c0_13, %c0_14] : memref<4x16x128xf32, #tpu.memory_space<vmem>>, vector<1x16x128xf32>
    %14 = vector.shape_cast %13 : vector<1x16x128xf32> to vector<16x128xf32>
    %cst_15 = arith.constant dense<0.000000e+00> : vector<16x128xf32>
    %15 = tpu.matmul %12, %14, %cst_15 {dimension_numbers = #tpu.dot_dimension_numbers<[1], [0], [0], [1], [0, 0, 1, 1], [], []>} : vector<16x16xf32>, vector<16x128xf32>, vector<16x128xf32> -> vector<16x128xf32>
    %16 = arith.addf %8, %15 : vector<16x128xf32>
    %c0_16 = arith.constant 0 : index
    %c2 = arith.constant 2 : index
    %c0_17 = arith.constant 0 : index
    %c0_18 = arith.constant 0 : index
    %17 = vector.load %arg1[%c0_16, %c2, %c0_17, %c0_18] : memref<1x4x16x16xf32, #tpu.memory_space<vmem>>, vector<1x1x16x16xf32>
    %18 = vector.shape_cast %17 : vector<1x1x16x16xf32> to vector<16x16xf32>
    %cst_19 = arith.constant 0.000000e+00 : f32
    %19 = vector.broadcast %cst_19 : f32 to vector<16x16xf32>
    %20 = arith.maximumf %18, %19 : vector<16x16xf32>
    %c2_20 = arith.constant 2 : index
    %c0_21 = arith.constant 0 : index
    %c0_22 = arith.constant 0 : index
    %21 = vector.load %arg2[%c2_20, %c0_21, %c0_22] : memref<4x16x128xf32, #tpu.memory_space<vmem>>, vector<1x16x128xf32>
    %22 = vector.shape_cast %21 : vector<1x16x128xf32> to vector<16x128xf32>
    %cst_23 = arith.constant dense<0.000000e+00> : vector<16x128xf32>
    %23 = tpu.matmul %20, %22, %cst_23 {dimension_numbers = #tpu.dot_dimension_numbers<[1], [0], [0], [1], [0, 0, 1, 1], [], []>} : vector<16x16xf32>, vector<16x128xf32>, vector<16x128xf32> -> vector<16x128xf32>
    %24 = arith.addf %16, %23 : vector<16x128xf32>
    %c0_24 = arith.constant 0 : index
    %c3 = arith.constant 3 : index
    %c0_25 = arith.constant 0 : index
    %c0_26 = arith.constant 0 : index
    %25 = vector.load %arg1[%c0_24, %c3, %c0_25, %c0_26] : memref<1x4x16x16xf32, #tpu.memory_space<vmem>>, vector<1x1x16x16xf32>
    %26 = vector.shape_cast %25 : vector<1x1x16x16xf32> to vector<16x16xf32>
    %cst_27 = arith.constant 0.000000e+00 : f32
    %27 = vector.broadcast %cst_27 : f32 to vector<16x16xf32>
    %28 = arith.maximumf %26, %27 : vector<16x16xf32>
    %c3_28 = arith.constant 3 : index
    %c0_29 = arith.constant 0 : index
    %c0_30 = arith.constant 0 : index
    %29 = vector.load %arg2[%c3_28, %c0_29, %c0_30] : memref<4x16x128xf32, #tpu.memory_space<vmem>>, vector<1x16x128xf32>
    %30 = vector.shape_cast %29 : vector<1x16x128xf32> to vector<16x128xf32>
    %cst_31 = arith.constant dense<0.000000e+00> : vector<16x128xf32>
    %31 = tpu.matmul %28, %30, %cst_31 {dimension_numbers = #tpu.dot_dimension_numbers<[1], [0], [0], [1], [0, 0, 1, 1], [], []>} : vector<16x16xf32>, vector<16x128xf32>, vector<16x128xf32> -> vector<16x128xf32>
    %32 = arith.addf %24, %31 : vector<16x128xf32>
    %c0_32 = arith.constant 0 : index
    %c0_33 = arith.constant 0 : index
    %33 = vector.load %arg3[%c0_32, %c0_33] : memref<1x128xf32, #tpu.memory_space<vmem>>, vector<1x128xf32>
    %34 = vector.broadcast %33 : vector<1x128xf32> to vector<16x128xf32>
    %35 = arith.addf %32, %34 : vector<16x128xf32>
    %c0_34 = arith.constant 0 : index
    %c0_35 = arith.constant 0 : index
    %c0_36 = arith.constant 0 : index
    %36 = vector.load %arg4[%c0_34, %c0_35, %c0_36] : memref<1x16x128xf32, #tpu.memory_space<vmem>>, vector<1x16x128xf32>
    %37 = vector.shape_cast %36 : vector<1x16x128xf32> to vector<16x128xf32>
    %38 = vector.shape_cast %35 : vector<16x128xf32> to vector<1x16x128xf32>
    tpu.vector_store %arg4[%c0_34, %c0_35, %c0_36], %38 {strides = array<i32>} : memref<1x16x128xf32, #tpu.memory_space<vmem>>, vector<1x16x128xf32>,
    return
  }
  func.func @transform_0(%arg0: i32) -> (i32, i32, i32, i32) {
    %c0_i32 = arith.constant 0 : i32
    %c0_i32_0 = arith.constant 0 : i32
    %c0_i32_1 = arith.constant 0 : i32
    %c0_i32_2 = arith.constant 0 : i32
    return %arg0, %c0_i32, %c0_i32_0, %c0_i32_1 : i32, i32, i32, i32
  }
  func.func @transform_1(%arg0: i32) -> (i32, i32, i32) {
    %c0_i32 = arith.constant 0 : i32
    %c0_i32_0 = arith.constant 0 : i32
    %c0_i32_1 = arith.constant 0 : i32
    %c0_i32_2 = arith.constant 0 : i32
    return %c0_i32, %c0_i32_0, %c0_i32_1 : i32, i32, i32
  }
  func.func @transform_2(%arg0: i32) -> (i32, i32) {
    %c0_i32 = arith.constant 0 : i32
    %c0_i32_0 = arith.constant 0 : i32
    %c0_i32_1 = arith.constant 0 : i32
    return %c0_i32, %c0_i32_0 : i32, i32
  }
  func.func @transform_3(%arg0: i32) -> (i32, i32, i32) {
    %c0_i32 = arith.constant 0 : i32
    %c0_i32_0 = arith.constant 0 : i32
    %c0_i32_1 = arith.constant 0 : i32
    return %arg0, %c0_i32, %c0_i32_0 : i32, i32, i32
  }
}

module attributes {stable_mosaic.version = 11 : i64} {
  func.func @_calibrate_kernel(%arg0: i32, %arg1: memref<1x4x16x16xf32, #tpu.memory_space<vmem>>, %arg2: memref<4x16x128xf32, #tpu.memory_space<vmem>>, %arg3: memref<1x128xf32, #tpu.memory_space<vmem>>, %arg4: memref<1x16x128xf32, #tpu.memory_space<vmem>>) attributes {dimension_semantics = [#tpu.dimension_semantics<parallel>], iteration_bounds = array<i64: 2>, scalar_prefetch = 0 : i64, scratch_operands = 0 : i64, tpu.core_type = #tpu.core_type<tc>, window_params = [{transform_indices = @transform_0, window_bounds = array<i64: 1, 4, 16, 16>}, {pipeline_mode = #tpu.pipeline_mode<synchronous>, transform_indices = @transform_1, window_bounds = array<i64: 4, 16, 128>}, {pipeline_mode = #tpu.pipeline_mode<synchronous>, transform_indices = @transform_2, window_bounds = array<i64: 1, 128>}, {transform_indices = @transform_3, window_bounds = array<i64: 1, 16, 128>}]} {
    %cst = arith.constant 0.000000e+00 : f32
    %0 = vector.broadcast %cst : f32 to vector<16x128xf32>
    %c0 = arith.constant 0 : index
    %c0_0 = arith.constant 0 : index
    %c0_1 = arith.constant 0 : index
    %c0_2 = arith.constant 0 : index
    %1 = vector.load %arg1[%c0, %c0_0, %c0_1, %c0_2] : memref<1x4x16x16xf32, #tpu.memory_space<vmem>>, vector<1x1x16x16xf32>
    %2 = vector.shape_cast %1 : vector<1x1x16x16xf32> to vector<16x16xf32>
    %cst_3 = arith.constant 0.000000e+00 : f32
    %3 = vector.broadcast %cst_3 : f32 to vector<16x16xf32>
    %4 = arith.maximumf %2, %3 : vector<16x16xf32>
    %c0_4 = arith.constant 0 : index
    %c0_5 = arith.constant 0 : index
    %c0_6 = arith.constant 0 : index
    %5 = vector.load %arg2[%c0_4, %c0_5, %c0_6] : memref<4x16x128xf32, #tpu.memory_space<vmem>>, vector<1x16x128xf32>
    %6 = vector.shape_cast %5 : vector<1x16x128xf32> to vector<16x128xf32>
    %cst_7 = arith.constant dense<0.000000e+00> : vector<16x128xf32>
    %7 = tpu.matmul %4, %6, %cst_7 {dimension_numbers = #tpu.dot_dimension_numbers<[1], [0], [0], [1], [0, 0, 1, 1], [], []>} : vector<16x16xf32>, vector<16x128xf32>, vector<16x128xf32> -> vector<16x128xf32>
    %8 = arith.addf %0, %7 : vector<16x128xf32>
    %c0_8 = arith.constant 0 : index
    %c1 = arith.constant 1 : index
    %c0_9 = arith.constant 0 : index
    %c0_10 = arith.constant 0 : index
    %9 = vector.load %arg1[%c0_8, %c1, %c0_9, %c0_10] : memref<1x4x16x16xf32, #tpu.memory_space<vmem>>, vector<1x1x16x16xf32>
    %10 = vector.shape_cast %9 : vector<1x1x16x16xf32> to vector<16x16xf32>
    %cst_11 = arith.constant 0.000000e+00 : f32
    %11 = vector.broadcast %cst_11 : f32 to vector<16x16xf32>
    %12 = arith.maximumf %10, %11 : vector<16x16xf32>
    %c1_12 = arith.constant 1 : index
    %c0_13 = arith.constant 0 : index
    %c0_14 = arith.constant 0 : index
    %13 = vector.load %arg2[%c1_12, %c0_13, %c0_14] : memref<4x16x128xf32, #tpu.memory_space<vmem>>, vector<1x16x128xf32>
    %14 = vector.shape_cast %13 : vector<1x16x128xf32> to vector<16x128xf32>
    %cst_15 = arith.constant dense<0.000000e+00> : vector<16x128xf32>
    %15 = tpu.matmul %12, %14, %cst_15 {dimension_numbers = #tpu.dot_dimension_numbers<[1], [0], [0], [1], [0, 0, 1, 1], [], []>} : vector<16x16xf32>, vector<16x128xf32>, vector<16x128xf32> -> vector<16x128xf32>
    %16 = arith.addf %8, %15 : vector<16x128xf32>
    %c0_16 = arith.constant 0 : index
    %c2 = arith.constant 2 : index
    %c0_17 = arith.constant 0 : index
    %c0_18 = arith.constant 0 : index
    %17 = vector.load %arg1[%c0_16, %c2, %c0_17, %c0_18] : memref<1x4x16x16xf32, #tpu.memory_space<vmem>>, vector<1x1x16x16xf32>
    %18 = vector.shape_cast %17 : vector<1x1x16x16xf32> to vector<16x16xf32>
    %cst_19 = arith.constant 0.000000e+00 : f32
    %19 = vector.broadcast %cst_19 : f32 to vector<16x16xf32>
    %20 = arith.maximumf %18, %19 : vector<16x16xf32>
    %c2_20 = arith.constant 2 : index
    %c0_21 = arith.constant 0 : index
    %c0_22 = arith.constant 0 : index
    %21 = vector.load %arg2[%c2_20, %c0_21, %c0_22] : memref<4x16x128xf32, #tpu.memory_space<vmem>>, vector<1x16x128xf32>
    %22 = vector.shape_cast %21 : vector<1x16x128xf32> to vector<16x128xf32>
    %cst_23 = arith.constant dense<0.000000e+00> : vector<16x128xf32>
    %23 = tpu.matmul %20, %22, %cst_23 {dimension_numbers = #tpu.dot_dimension_numbers<[1], [0], [0], [1], [0, 0, 1, 1], [], []>} : vector<16x16xf32>, vector<16x128xf32>, vector<16x128xf32> -> vector<16x128xf32>
    %24 = arith.addf %16, %23 : vector<16x128xf32>
    %c0_24 = arith.constant 0 : index
    %c3 = arith.constant 3 : index
    %c0_25 = arith.constant 0 : index
    %c0_26 = arith.constant 0 : index
    %25 = vector.load %arg1[%c0_24, %c3, %c0_25, %c0_26] : memref<1x4x16x16xf32, #tpu.memory_space<vmem>>, vector<1x1x16x16xf32>
    %26 = vector.shape_cast %25 : vector<1x1x16x16xf32> to vector<16x16xf32>
    %cst_27 = arith.constant 0.000000e+00 : f32
    %27 = vector.broadcast %cst_27 : f32 to vector<16x16xf32>
    %28 = arith.maximumf %26, %27 : vector<16x16xf32>
    %c3_28 = arith.constant 3 : index
    %c0_29 = arith.constant 0 : index
    %c0_30 = arith.constant 0 : index
    %29 = vector.load %arg2[%c3_28, %c0_29, %c0_30] : memref<4x16x128xf32, #tpu.memory_space<vmem>>, vector<1x16x128xf32>
    %30 = vector.shape_cast %29 : vector<1x16x128xf32> to vector<16x128xf32>
    %cst_31 = arith.constant dense<0.000000e+00> : vector<16x128xf32>
    %31 = tpu.matmul %28, %30, %cst_31 {dimension_numbers = #tpu.dot_dimension_numbers<[1], [0], [0], [1], [0, 0, 1, 1], [], []>} : vector<16x16xf32>, vector<16x128xf32>, vector<16x128xf32> -> vector<16x128xf32>
    %32 = arith.addf %24, %31 : vector<16x128xf32>
    %c0_32 = arith.constant 0 : index
    %c0_33 = arith.constant 0 : index
    %33 = vector.load %arg3[%c0_32, %c0_33] : memref<1x128xf32, #tpu.memory_space<vmem>>, vector<1x128xf32>
    %34 = vector.broadcast %33 : vector<1x128xf32> to vector<16x128xf32>
    %35 = arith.addf %32, %34 : vector<16x128xf32>
    %c0_34 = arith.constant 0 : index
    %c0_35 = arith.constant 0 : index
    %c0_36 = arith.constant 0 : index
    %36 = vector.load %arg4[%c0_34, %c0_35, %c0_36] : memref<1x16x128xf32, #tpu.memory_space<vmem>>, vector<1x16x128xf32>
    %37 = vector.shape_cast %36 : vector<1x16x128xf32> to vector<16x128xf32>
    %38 = vector.shape_cast %35 : vector<16x128xf32> to vector<1x16x128xf32>
    tpu.vector_store %arg4[%c0_34, %c0_35, %c0_36], %38 {strides = array<i32>} : memref<1x16x128xf32, #tpu.memory_space<vmem>>, vector<1x16x128xf32>,
    return
  }
  func.func @transform_0(%arg0: i32) -> (i32, i32, i32, i32) {
    %c0_i32 = arith.constant 0 : i32
    %c0_i32_0 = arith.constant 0 : i32
    %c0_i32_1 = arith.constant 0 : i32
    %c0_i32_2 = arith.constant 0 : i32
    return %arg0, %c0_i32, %c0_i32_0, %c0_i32_1 : i32, i32, i32, i32
  }
  func.func @transform_1(%arg0: i32) -> (i32, i32, i32) {
    %c0_i32 = arith.constant 0 : i32
    %c0_i32_0 = arith.constant 0 : i32
    %c0_i32_1 = arith.constant 0 : i32
    %c0_i32_2 = arith.constant 0 : i32
    return %c0_i32, %c0_i32_0, %c0_i32_1 : i32, i32, i32
  }
  func.func @transform_2(%arg0: i32) -> (i32, i32) {
    %c0_i32 = arith.constant 0 : i32
    %c0_i32_0 = arith.constant 0 : i32
    %c0_i32_1 = arith.constant 0 : i32
    return %c0_i32, %c0_i32_0 : i32, i32
  }
  func.func @transform_3(%arg0: i32) -> (i32, i32, i32) {
    %c0_i32 = arith.constant 0 : i32
    %c0_i32_0 = arith.constant 0 : i32
    %c0_i32_1 = arith.constant 0 : i32
    return %arg0, %c0_i32, %c0_i32_0 : i32, i32, i32
  }
}

module attributes {stable_mosaic.version = 11 : i64} {
  func.func @_node_kernel(%arg0: i32, %arg1: memref<1x16x128xf32, #tpu.memory_space<vmem>>, %arg2: memref<1x16x128xf32, #tpu.memory_space<vmem>>, %arg3: memref<1x16x128xf32, #tpu.memory_space<vmem>>) attributes {dimension_semantics = [#tpu.dimension_semantics<parallel>], iteration_bounds = array<i64: 2>, scalar_prefetch = 0 : i64, scratch_operands = 0 : i64, tpu.core_type = #tpu.core_type<tc>, window_params = [{transform_indices = @transform_0, window_bounds = array<i64: 1, 16, 128>}, {transform_indices = @transform_1, window_bounds = array<i64: 1, 16, 128>}, {transform_indices = @transform_2, window_bounds = array<i64: 1, 16, 128>}]} {
    %0 = tpu.iota {dimensions = array<i32: 0>} : vector<16x128xi32>
    %1 = tpu.iota {dimensions = array<i32: 1>} : vector<16x128xi32>
    %c0_i32 = arith.constant 0 : i32
    %2 = vector.broadcast %c0_i32 : i32 to vector<16x128xi32>
    %3 = arith.cmpi eq, %0, %2 : vector<16x128xi32>
    %4 = arith.extui %3 : vector<16x128xi1> to vector<16x128xi32>
    %c3_i32 = arith.constant 3 : i32
    %5 = vector.broadcast %c3_i32 : i32 to vector<16x128xi32>
    %6 = arith.subi %5, %4 : vector<16x128xi32>
    %c15_i32 = arith.constant 15 : i32
    %7 = vector.broadcast %c15_i32 : i32 to vector<16x128xi32>
    %8 = arith.cmpi eq, %0, %7 : vector<16x128xi32>
    %9 = arith.extui %8 : vector<16x128xi1> to vector<16x128xi32>
    %10 = arith.subi %6, %9 : vector<16x128xi32>
    %c8_i32 = arith.constant 8 : i32
    %11 = vector.broadcast %c8_i32 : i32 to vector<16x128xi32>
    %12 = arith.cmpi slt, %1, %11 : vector<16x128xi32>
    %13 = arith.extui %12 : vector<16x128xi1> to vector<16x128xi32>
    %c3_i32_0 = arith.constant 3 : i32
    %14 = vector.broadcast %c3_i32_0 : i32 to vector<16x128xi32>
    %15 = arith.subi %14, %13 : vector<16x128xi32>
    %c120_i32 = arith.constant 120 : i32
    %16 = vector.broadcast %c120_i32 : i32 to vector<16x128xi32>
    %17 = arith.cmpi sge, %1, %16 : vector<16x128xi32>
    %18 = arith.extui %17 : vector<16x128xi1> to vector<16x128xi32>
    %19 = arith.subi %15, %18 : vector<16x128xi32>
    %c3_i32_1 = arith.constant 3 : i32
    %20 = vector.broadcast %c3_i32_1 : i32 to vector<16x128xi32>
    %21 = arith.cmpi eq, %10, %20 : vector<16x128xi32>
    %c2_i32 = arith.constant 2 : i32
    %22 = vector.broadcast %c2_i32 : i32 to vector<16x128xi32>
    %23 = arith.cmpi eq, %10, %22 : vector<16x128xi32>
    %cst = arith.constant 5.000000e-01 : f32
    %cst_2 = arith.constant 1.000000e+00 : f32
    %24 = vector.broadcast %cst : f32 to vector<16x128xf32>
    %25 = vector.broadcast %cst_2 : f32 to vector<16x128xf32>
    %26 = arith.select %23, %24, %25 : vector<16x128xi1>, vector<16x128xf32>
    %cst_3 = arith.constant 0.333333343 : f32
    %27 = vector.broadcast %cst_3 : f32 to vector<16x128xf32>
    %28 = arith.select %21, %27, %26 : vector<16x128xi1>, vector<16x128xf32>
    %c3_i32_4 = arith.constant 3 : i32
    %29 = vector.broadcast %c3_i32_4 : i32 to vector<16x128xi32>
    %30 = arith.cmpi eq, %19, %29 : vector<16x128xi32>
    %c2_i32_5 = arith.constant 2 : i32
    %31 = vector.broadcast %c2_i32_5 : i32 to vector<16x128xi32>
    %32 = arith.cmpi eq, %19, %31 : vector<16x128xi32>
    %cst_6 = arith.constant 5.000000e-01 : f32
    %cst_7 = arith.constant 1.000000e+00 : f32
    %33 = vector.broadcast %cst_6 : f32 to vector<16x128xf32>
    %34 = vector.broadcast %cst_7 : f32 to vector<16x128xf32>
    %35 = arith.select %32, %33, %34 : vector<16x128xi1>, vector<16x128xf32>
    %cst_8 = arith.constant 0.333333343 : f32
    %36 = vector.broadcast %cst_8 : f32 to vector<16x128xf32>
    %37 = arith.select %30, %36, %35 : vector<16x128xi1>, vector<16x128xf32>
    %38 = arith.mulf %28, %37 : vector<16x128xf32>
    %c0 = arith.constant 0 : index
    %c0_9 = arith.constant 0 : index
    %c0_10 = arith.constant 0 : index
    %39 = vector.load %arg1[%c0, %c0_9, %c0_10] : memref<1x16x128xf32, #tpu.memory_space<vmem>>, vector<1x16x128xf32>
    %40 = vector.shape_cast %39 : vector<1x16x128xf32> to vector<16x128xf32>
    %41 = tpu.iota {dimensions = array<i32: 0>} : vector<16x128xi32>
    %42 = tpu.iota {dimensions = array<i32: 1>} : vector<16x128xi32>
    %c1_i32 = arith.constant 1 : i32
    %43 = tpu.dynamic_rotate %40 by %c1_i32 dim 0 : vector<16x128xf32>, i32 -> vector<16x128xf32>
    %c8_i32_11 = arith.constant 8 : i32
    %44 = tpu.dynamic_rotate %43 by %c8_i32_11 dim 1 : vector<16x128xf32>, i32 -> vector<16x128xf32>
    %c1_i32_12 = arith.constant 1 : i32
    %45 = vector.broadcast %c1_i32_12 : i32 to vector<16x128xi32>
    %46 = arith.cmpi sge, %41, %45 : vector<16x128xi32>
    %c8_i32_13 = arith.constant 8 : i32
    %47 = vector.broadcast %c8_i32_13 : i32 to vector<16x128xi32>
    %48 = arith.cmpi sge, %42, %47 : vector<16x128xi32>
    %49 = arith.andi %46, %48 : vector<16x128xi1>
    %cst_14 = arith.constant 0.000000e+00 : f32
    %50 = vector.broadcast %cst_14 : f32 to vector<16x128xf32>
    %51 = arith.select %49, %44, %50 : vector<16x128xi1>, vector<16x128xf32>
    %c1_i32_15 = arith.constant 1 : i32
    %52 = tpu.dynamic_rotate %40 by %c1_i32_15 dim 0 : vector<16x128xf32>, i32 -> vector<16x128xf32>
    %c1_i32_16 = arith.constant 1 : i32
    %53 = vector.broadcast %c1_i32_16 : i32 to vector<16x128xi32>
    %54 = arith.cmpi sge, %41, %53 : vector<16x128xi32>
    %cst_17 = arith.constant 0.000000e+00 : f32
    %55 = vector.broadcast %cst_17 : f32 to vector<16x128xf32>
    %56 = arith.select %54, %52, %55 : vector<16x128xi1>, vector<16x128xf32>
    %57 = arith.addf %51, %56 : vector<16x128xf32>
    %c1_i32_18 = arith.constant 1 : i32
    %58 = tpu.dynamic_rotate %40 by %c1_i32_18 dim 0 : vector<16x128xf32>, i32 -> vector<16x128xf32>
    %c120_i32_19 = arith.constant 120 : i32
    %59 = tpu.dynamic_rotate %58 by %c120_i32_19 dim 1 : vector<16x128xf32>, i32 -> vector<16x128xf32>
    %c1_i32_20 = arith.constant 1 : i32
    %60 = vector.broadcast %c1_i32_20 : i32 to vector<16x128xi32>
    %61 = arith.cmpi sge, %41, %60 : vector<16x128xi32>
    %c120_i32_21 = arith.constant 120 : i32
    %62 = vector.broadcast %c120_i32_21 : i32 to vector<16x128xi32>
    %63 = arith.cmpi slt, %42, %62 : vector<16x128xi32>
    %64 = arith.andi %61, %63 : vector<16x128xi1>
    %cst_22 = arith.constant 0.000000e+00 : f32
    %65 = vector.broadcast %cst_22 : f32 to vector<16x128xf32>
    %66 = arith.select %64, %59, %65 : vector<16x128xi1>, vector<16x128xf32>
    %67 = arith.addf %57, %66 : vector<16x128xf32>
    %c8_i32_23 = arith.constant 8 : i32
    %68 = tpu.dynamic_rotate %40 by %c8_i32_23 dim 1 : vector<16x128xf32>, i32 -> vector<16x128xf32>
    %c8_i32_24 = arith.constant 8 : i32
    %69 = vector.broadcast %c8_i32_24 : i32 to vector<16x128xi32>
    %70 = arith.cmpi sge, %42, %69 : vector<16x128xi32>
    %cst_25 = arith.constant 0.000000e+00 : f32
    %71 = vector.broadcast %cst_25 : f32 to vector<16x128xf32>
    %72 = arith.select %70, %68, %71 : vector<16x128xi1>, vector<16x128xf32>
    %73 = arith.addf %67, %72 : vector<16x128xf32>
    %74 = arith.addf %73, %40 : vector<16x128xf32>
    %c120_i32_26 = arith.constant 120 : i32
    %75 = tpu.dynamic_rotate %40 by %c120_i32_26 dim 1 : vector<16x128xf32>, i32 -> vector<16x128xf32>
    %c120_i32_27 = arith.constant 120 : i32
    %76 = vector.broadcast %c120_i32_27 : i32 to vector<16x128xi32>
    %77 = arith.cmpi slt, %42, %76 : vector<16x128xi32>
    %cst_28 = arith.constant 0.000000e+00 : f32
    %78 = vector.broadcast %cst_28 : f32 to vector<16x128xf32>
    %79 = arith.select %77, %75, %78 : vector<16x128xi1>, vector<16x128xf32>
    %80 = arith.addf %74, %79 : vector<16x128xf32>
    %c15_i32_29 = arith.constant 15 : i32
    %81 = tpu.dynamic_rotate %40 by %c15_i32_29 dim 0 : vector<16x128xf32>, i32 -> vector<16x128xf32>
    %c8_i32_30 = arith.constant 8 : i32
    %82 = tpu.dynamic_rotate %81 by %c8_i32_30 dim 1 : vector<16x128xf32>, i32 -> vector<16x128xf32>
    %c15_i32_31 = arith.constant 15 : i32
    %83 = vector.broadcast %c15_i32_31 : i32 to vector<16x128xi32>
    %84 = arith.cmpi slt, %41, %83 : vector<16x128xi32>
    %c8_i32_32 = arith.constant 8 : i32
    %85 = vector.broadcast %c8_i32_32 : i32 to vector<16x128xi32>
    %86 = arith.cmpi sge, %42, %85 : vector<16x128xi32>
    %87 = arith.andi %84, %86 : vector<16x128xi1>
    %cst_33 = arith.constant 0.000000e+00 : f32
    %88 = vector.broadcast %cst_33 : f32 to vector<16x128xf32>
    %89 = arith.select %87, %82, %88 : vector<16x128xi1>, vector<16x128xf32>
    %90 = arith.addf %80, %89 : vector<16x128xf32>
    %c15_i32_34 = arith.constant 15 : i32
    %91 = tpu.dynamic_rotate %40 by %c15_i32_34 dim 0 : vector<16x128xf32>, i32 -> vector<16x128xf32>
    %c15_i32_35 = arith.constant 15 : i32
    %92 = vector.broadcast %c15_i32_35 : i32 to vector<16x128xi32>
    %93 = arith.cmpi slt, %41, %92 : vector<16x128xi32>
    %cst_36 = arith.constant 0.000000e+00 : f32
    %94 = vector.broadcast %cst_36 : f32 to vector<16x128xf32>
    %95 = arith.select %93, %91, %94 : vector<16x128xi1>, vector<16x128xf32>
    %96 = arith.addf %90, %95 : vector<16x128xf32>
    %c15_i32_37 = arith.constant 15 : i32
    %97 = tpu.dynamic_rotate %40 by %c15_i32_37 dim 0 : vector<16x128xf32>, i32 -> vector<16x128xf32>
    %c120_i32_38 = arith.constant 120 : i32
    %98 = tpu.dynamic_rotate %97 by %c120_i32_38 dim 1 : vector<16x128xf32>, i32 -> vector<16x128xf32>
    %c15_i32_39 = arith.constant 15 : i32
    %99 = vector.broadcast %c15_i32_39 : i32 to vector<16x128xi32>
    %100 = arith.cmpi slt, %41, %99 : vector<16x128xi32>
    %c120_i32_40 = arith.constant 120 : i32
    %101 = vector.broadcast %c120_i32_40 : i32 to vector<16x128xi32>
    %102 = arith.cmpi slt, %42, %101 : vector<16x128xi32>
    %103 = arith.andi %100, %102 : vector<16x128xi1>
    %cst_41 = arith.constant 0.000000e+00 : f32
    %104 = vector.broadcast %cst_41 : f32 to vector<16x128xf32>
    %105 = arith.select %103, %98, %104 : vector<16x128xi1>, vector<16x128xf32>
    %106 = arith.addf %96, %105 : vector<16x128xf32>
    %107 = arith.mulf %106, %38 : vector<16x128xf32>
    %c0_42 = arith.constant 0 : index
    %c0_43 = arith.constant 0 : index
    %c0_44 = arith.constant 0 : index
    %108 = vector.load %arg2[%c0_42, %c0_43, %c0_44] : memref<1x16x128xf32, #tpu.memory_space<vmem>>, vector<1x16x128xf32>
    %109 = vector.shape_cast %108 : vector<1x16x128xf32> to vector<16x128xf32>
    %110 = arith.addf %107, %109 : vector<16x128xf32>
    %c0_45 = arith.constant 0 : index
    %c0_46 = arith.constant 0 : index
    %c0_47 = arith.constant 0 : index
    %111 = vector.load %arg3[%c0_45, %c0_46, %c0_47] : memref<1x16x128xf32, #tpu.memory_space<vmem>>, vector<1x16x128xf32>
    %112 = vector.shape_cast %111 : vector<1x16x128xf32> to vector<16x128xf32>
    %113 = vector.shape_cast %110 : vector<16x128xf32> to vector<1x16x128xf32>
    tpu.vector_store %arg3[%c0_45, %c0_46, %c0_47], %113 {strides = array<i32>} : memref<1x16x128xf32, #tpu.memory_space<vmem>>, vector<1x16x128xf32>,
    return
  }
  func.func @transform_0(%arg0: i32) -> (i32, i32, i32) {
    %c0_i32 = arith.constant 0 : i32
    %c0_i32_0 = arith.constant 0 : i32
    %c0_i32_1 = arith.constant 0 : i32
    return %arg0, %c0_i32, %c0_i32_0 : i32, i32, i32
  }
  func.func @transform_1(%arg0: i32) -> (i32, i32, i32) {
    %c0_i32 = arith.constant 0 : i32
    %c0_i32_0 = arith.constant 0 : i32
    %c0_i32_1 = arith.constant 0 : i32
    return %arg0, %c0_i32, %c0_i32_0 : i32, i32, i32
  }
  func.func @transform_2(%arg0: i32) -> (i32, i32, i32) {
    %c0_i32 = arith.constant 0 : i32
    %c0_i32_0 = arith.constant 0 : i32
    %c0_i32_1 = arith.constant 0 : i32
    return %arg0, %c0_i32, %c0_i32_0 : i32, i32, i32
  }
}

</mosaic_0001>

<llo_original>
// kernel: _lambda_.6
$region0: #{_lambda_.6}
  #allocation0 [shape = 'u32[]', space=smem, size = 0x4, offset = 0x4, fixed_abs, tag = 'smem constant byte address 0x4 - core index']
  #allocation1 [shape = 'u32[144,128]{1,0:T(1,128)}', space=vmem, size = 0x12000, scoped, tag = 'internal scratch']
  %s0 = inlined_call_operand.vmem [shape: f32[2,16,128], index: 0, kind: input, shape index: {}]
  %s1 = inlined_call_operand.vmem [shape: f32[2,16,128], index: 1, kind: input, shape index: {}]
  %s2 = inlined_call_operand.vmem [shape: f32[2,16,128], index: 2, kind: output, shape index: {}]
  %s3 = sld [smem:[#allocation0]]
  $region41: #{_lambda_.6} parent=0
    _
  %s5 = ssub.s32 1, %s3
  %s6 = scalar_select 0, %s5, %s3
  loop: start=0, step=1, limit=4
  $region2: #{_lambda_.6} parent=0 // loop_pre_header
    _
  $region3: #{_lambda_.6} parent=0 // loop_header
    %s8 = sphi 0, %s12
    %p9 = scmp.ge.s32.totalorder %s8, 4
    %s18 = sphi 0, %s20
    %s21 = sphi 0, %s18
    %s22 = sphi 0, %s21
    %s38 = sphi 0, %s22
    %s44 = sphi 0, %s46
    %s47 = sphi 0, %s44
    %s48 = sphi 0, %s47
    %s64 = sphi 0, %s48
    %s70 = sphi 0, %s72
    %s73 = sphi 0, %s70
    %s74 = sphi 0, %s73
    %s90 = sphi 0, %s74
  $region4: #{_lambda_.6} parent=0 // loop_header_branch
    %11 = sbr.rel (%p9) target = $region8
  $region5: #{_lambda_.6} parent=0 // loop_body
    %s13 = ssub.s32 %s8, 1
    %s14 = ssub.s32 %s8, 2
    %s15 = sadd.s32 %s8, 1
    %s16 = ssub.s32 %s8, %s15
    %p17 = scmp.eq.s32.totalorder %s16, 0
    %s19 = sadd.s32 %s18, 1
    %s20 = scalar_select %p17, %s18, %s19
    %p23 = pneg %p17
    %p24 = scmp.eq.s32.totalorder %s8, 1
    %p25 = por %p23, %p24
    %p26 = scmp.ne.s32.totalorder %s18, %s21
    %p27 = scmp.eq.s32.totalorder %s8, 0
    %p28 = por %p26, %p27
    %p29 = scmp.ne.s32.totalorder %s18, %s21
    %p30 = scmp.eq.s32.totalorder %s13, 1
    %p31 = por %p29, %p30
    %p32 = scmp.ne.s32.totalorder %s21, %s22
    %p33 = scmp.eq.s32.totalorder %s13, 0
    %p34 = por %p32, %p33
    %p35 = scmp.ne.s32.totalorder %s21, %s22
    %p36 = scmp.eq.s32.totalorder %s14, 1
    %p37 = por %p35, %p36
    %p39 = scmp.ne.s32.totalorder %s22, %s38
    %p40 = scmp.eq.s32.totalorder %s14, 0
    %p41 = por %p39, %p40
    %s42 = ssub.s32 %s8, %s15
    %p43 = scmp.eq.s32.totalorder %s42, 0
    %s45 = sadd.s32 %s44, 1
    %s46 = scalar_select %p43, %s44, %s45
    %p49 = pneg %p43
    %p50 = scmp.eq.s32.totalorder %s8, 1
    %p51 = por %p49, %p50
    %p52 = scmp.ne.s32.totalorder %s44, %s47
    %p53 = scmp.eq.s32.totalorder %s8, 0
    %p54 = por %p52, %p53
    %p55 = scmp.ne.s32.totalorder %s44, %s47
    %p56 = scmp.eq.s32.totalorder %s13, 1
    %p57 = por %p55, %p56
    %p58 = scmp.ne.s32.totalorder %s47, %s48
    %p59 = scmp.eq.s32.totalorder %s13, 0
    %p60 = por %p58, %p59
    %p61 = scmp.ne.s32.totalorder %s47, %s48
    %p62 = scmp.eq.s32.totalorder %s14, 1
    %p63 = por %p61, %p62
    %p65 = scmp.ne.s32.totalorder %s48, %s64
    %p66 = scmp.eq.s32.totalorder %s14, 0
    %p67 = por %p65, %p66
    %s68 = ssub.s32 %s8, %s15
    %p69 = scmp.eq.s32.totalorder %s68, 0
    %s71 = sadd.s32 %s70, 1
    %s72 = scalar_select %p69, %s70, %s71
    %p75 = pneg %p69
    %p76 = scmp.eq.s32.totalorder %s8, 1
    %p77 = por %p75, %p76
    %p78 = scmp.ne.s32.totalorder %s70, %s73
    %p79 = scmp.eq.s32.totalorder %s8, 0
    %p80 = por %p78, %p79
    %p81 = scmp.ne.s32.totalorder %s70, %s73
    %p82 = scmp.eq.s32.totalorder %s13, 1
    %p83 = por %p81, %p82
    %p84 = scmp.ne.s32.totalorder %s73, %s74
    %p85 = scmp.eq.s32.totalorder %s13, 0
    %p86 = por %p84, %p85
    %p87 = scmp.ne.s32.totalorder %s73, %s74
    %p88 = scmp.eq.s32.totalorder %s14, 1
    %p89 = por %p87, %p88
    %p91 = scmp.ne.s32.totalorder %s74, %s90
    %p92 = scmp.eq.s32.totalorder %s14, 0
    %p93 = por %p91, %p92
    %p94 = scmp.le.s32.totalorder 1, %s8
    %p95 = scmp.lt.s32.totalorder %s8, 3
    %p96 = pnand %p94, %p95
    %p97 = pneg %p96
    // Predicated region
    $region9: #{_lambda_.6} parent=5 // pred_check
      _
    $region10: #{_lambda_.6} parent=5 // pred_check_branch
      %99 = sbr.rel (%p96) target = $region12
    $region11: #{_lambda_.6} parent=5 // pred_region
      %s100 = ssub.s32 %s8, 1
    $region12: #{_lambda_.6} parent=5 // pred_fallthru
      _
    %p101 = scmp.lt.s32.totalorder %s8, 2
    // Predicated region
    $region13: #{_lambda_.6} parent=5 // pred_check
      %p102 = pneg %p101
    $region14: #{_lambda_.6} parent=5 // pred_check_branch
      %104 = sbr.rel (%p102) target = $region16
    $region15: #{_lambda_.6} parent=5 // pred_region
      // Predicated region
      $region17: #{_lambda_.6} parent=15 // pred_check
        %p105 = pneg %p28
      $region18: #{_lambda_.6} parent=15 // pred_check_branch
        %107 = sbr.rel (%p105) target = $region20
      $region19: #{_lambda_.6} parent=15 // pred_region
        %p108 = scmp.lt.s32.totalorder %s8, 1
        %s109 = scalar_select %p108, %s8, 1
        %s110 = smul.addr %s109, 2
        %s111 = smul.addr %s110, 8
        %s112 = scalar_lea.vmem %s0, %s111
      $region20: #{_lambda_.6} parent=15 // pred_fallthru
        _
      // Predicated region
      $region21: #{_lambda_.6} parent=15 // pred_check
        %p113 = pneg %p54
      $region22: #{_lambda_.6} parent=15 // pred_check_branch
        %115 = sbr.rel (%p113) target = $region24
      $region23: #{_lambda_.6} parent=15 // pred_region
        %p116 = scmp.lt.s32.totalorder %s8, 1
        %s117 = scalar_select %p116, %s8, 1
        %s118 = smul.addr %s117, 2
        %s119 = smul.addr %s118, 8
        %s120 = scalar_lea.vmem %s1, %s119
      $region24: #{_lambda_.6} parent=15 // pred_fallthru
        _
    $region16: #{_lambda_.6} parent=5 // pred_fallthru
      _
    %p121 = scmp.le.s32.totalorder 1, %s8
    %p122 = scmp.lt.s32.totalorder %s8, 3
    %p123 = pnand %p121, %p122
    %p124 = pneg %p123
    // Predicated region
    $region25: #{_lambda_.6} parent=5 // pred_check
      _
    $region26: #{_lambda_.6} parent=5 // pred_check_branch
      %126 = sbr.rel (%p123) target = $region28
    $region27: #{_lambda_.6} parent=5 // pred_region
      %s127 = ssub.s32 %s8, 1
      %p128 = scmp.lt.s32.totalorder %s13, 1
      %s129 = scalar_select %p128, %s13, 1
      %s130 = smul.addr %s129, 2
      %s131 = smul.addr %s130, 8
      %s132 = scalar_lea.vmem %s0, %s131
      %p133 = pneg %p34
      %p134 = pneg %p31
      %p135 = scmp.lt.s32.totalorder %s13, 1
      %s136 = scalar_select %p135, %s13, 1
      %s137 = smul.addr %s136, 2
      %s138 = smul.addr %s137, 8
      %s139 = scalar_lea.vmem %s1, %s138
      %p140 = pneg %p60
      %p141 = pneg %p57
      %p142 = pneg %p86
      %p143 = pneg %p83
      %p144 = scmp.lt.s32.totalorder %s13, 1
      %s145 = scalar_select %p144, %s13, 1
      %s146 = smul.addr %s145, 2
      %s147 = smul.addr %s146, 8
      %s148 = scalar_lea.vmem %s2, %s147
      %p149 = scmp.lt.s32.totalorder %s13, 1
      %s150 = scalar_select %p149, %s13, 1
      %s151 = smul.addr %s150, 2
      %s152 = smul.addr %s151, 8
      %s153 = scalar_lea.vmem %s0, %s152
      %p154 = scmp.lt.s32.totalorder %s13, 1
      %s155 = scalar_select %p154, %s13, 1
      %s156 = smul.addr %s155, 2
      %s157 = smul.addr %s156, 8
      %s158 = scalar_lea.vmem %s1, %s157
      %p159 = scmp.lt.s32.totalorder %s13, 1
      %s160 = scalar_select %p159, %s13, 1
      %s161 = smul.addr %s160, 2
      %s162 = smul.addr %s161, 8
      %s163 = scalar_lea.vmem %s2, %s162
      %v164 = vld [vmem:[%s153] sm:$0xff]
      %v165 = vld [vmem:[%s153 + $0x8] sm:$0xff]
      %v166 = vld [vmem:[%s158] sm:$0xff]
      %v167 = vld [vmem:[%s158 + $0x8] sm:$0xff]
      %v168 = vlaneseq
      %v169 = vshrl.u32 %v168, 7
      %v170 = vadd.s32 %v169, 8
      %v171 = vlaneseq
      %v172 = vand.u32 %v171, 127
      %v173 = vrot.slane %v166, 7
      %v174 = vrot.slane %v167, 7
      %vm175 = vcmp.lt.s32.totalorder %v169, 1
      %v176 = vsel %vm175, %v173, %v174
      %v177 = vsel %vm175, %v174, %v173
      %178 = vrot.lane.b32.xlu0 %v177, 8
      %v179 = vpop.permute.xlu0 %178
      %180 = vrot.lane.b32.xlu0 %v176, 8
      %v181 = vpop.permute.xlu0 %180
      %vm182 = vcmp.ge.s32.totalorder %v169, 1
      %vm183 = vcmp.ge.s32.totalorder %v170, 1
      %vm184 = vcmp.ge.s32.totalorder %v172, 8
      %vm185 = vmand %vm182, %vm184
      %vm186 = vmand %vm183, %vm184
      %v187 = vsel %vm185, %v179, -inf
      %v188 = vsel %vm186, %v181, -inf
      %v189 = vsel %vm182, %v177, -inf
      %v190 = vsel %vm183, %v176, -inf
      %v191 = vmax.f32 %v187, %v189
      %v192 = vmax.f32 %v188, %v190
      %193 = vrot.lane.b32.xlu0 %v177, 120
      %v194 = vpop.permute.xlu0 %193
      %195 = vrot.lane.b32.xlu0 %v176, 120
      %v196 = vpop.permute.xlu0 %195
      %vm197 = vcmp.lt.s32.totalorder %v172, 120
      %vm198 = vmand %vm182, %vm197
      %vm199 = vmand %vm183, %vm197
      %v200 = vsel %vm198, %v194, -inf
      %v201 = vsel %vm199, %v196, -inf
      %v202 = vmax.f32 %v191, %v200
      %v203 = vmax.f32 %v192, %v201
      %204 = vrot.lane.b32.xlu0 %v166, 8
      %v205 = vpop.permute.xlu0 %204
      %206 = vrot.lane.b32.xlu0 %v167, 8
      %v207 = vpop.permute.xlu0 %206
      %v208 = vsel %vm184, %v205, -inf
      %v209 = vsel %vm184, %v207, -inf
      %v210 = vmax.f32 %v202, %v208
      %v211 = vmax.f32 %v203, %v209
      %v212 = vmax.f32 %v210, %v166
      %v213 = vmax.f32 %v211, %v167
      %214 = vrot.lane.b32.xlu0 %v166, 120
      %v215 = vpop.permute.xlu0 %214
      %216 = vrot.lane.b32.xlu0 %v167, 120
      %v217 = vpop.permute.xlu0 %216
      %v218 = vsel %vm197, %v215, -inf
      %v219 = vsel %vm197, %v217, -inf
      %v220 = vmax.f32 %v212, %v218
      %v221 = vmax.f32 %v213, %v219
      %v222 = vrot.slane %v166, 1
      %v223 = vrot.slane %v167, 1
      %vm224 = vcmp.lt.s32.totalorder %v169, 7
      %v225 = vsel %vm224, %v222, %v223
      %v226 = vsel %vm224, %v223, %v222
      %227 = vrot.lane.b32.xlu0 %v225, 8
      %v228 = vpop.permute.xlu0 %227
      %229 = vrot.lane.b32.xlu0 %v226, 8
      %v230 = vpop.permute.xlu0 %229
      %vm231 = vcmp.lt.s32.totalorder %v169, 15
      %vm232 = vcmp.lt.s32.totalorder %v170, 15
      %vm233 = vmand %vm231, %vm184
      %vm234 = vmand %vm232, %vm184
      %v235 = vsel %vm233, %v228, -inf
      %v236 = vsel %vm234, %v230, -inf
      %v237 = vmax.f32 %v220, %v235
      %v238 = vmax.f32 %v221, %v236
      %v239 = vsel %vm231, %v225, -inf
      %v240 = vsel %vm232, %v226, -inf
      %v241 = vmax.f32 %v237, %v239
      %v242 = vmax.f32 %v238, %v240
      %243 = vrot.lane.b32.xlu0 %v225, 120
      %v244 = vpop.permute.xlu0 %243
      %245 = vrot.lane.b32.xlu0 %v226, 120
      %v246 = vpop.permute.xlu0 %245
      %vm247 = vmand %vm231, %vm197
      %vm248 = vmand %vm232, %vm197
      %v249 = vsel %vm247, %v244, -inf
      %v250 = vsel %vm248, %v246, -inf
      %v251 = vmax.f32 %v241, %v249
      %v252 = vmax.f32 %v242, %v250
      %v253 = vadd.f32 %v164, %v251
      %v254 = vadd.f32 %v165, %v252
      %255 = vst [vmem:[%s163] sm:$0xff] %v253
      %256 = vst [vmem:[%s163 + $0x8] sm:$0xff] %v254
      %p257 = scmp.lt.s32.totalorder %s13, 1
      %s258 = scalar_select %p257, %s13, 1
      %s259 = smul.addr %s258, 2
      %s260 = smul.addr %s259, 8
      %s261 = scalar_lea.vmem %s2, %s260
      // Predicated region
      $region29: #{_lambda_.6} parent=27 // pred_check
        %p262 = pneg %p83
      $region30: #{_lambda_.6} parent=27 // pred_check_branch
        %264 = sbr.rel (%p262) target = $region32
      $region31: #{_lambda_.6} parent=27 // pred_region
        _
      $region32: #{_lambda_.6} parent=27 // pred_fallthru
        _
    $region28: #{_lambda_.6} parent=5 // pred_fallthru
      _
    %p265 = scmp.le.s32.totalorder 2, %s8
    // Predicated region
    $region33: #{_lambda_.6} parent=5 // pred_check
      %p266 = pneg %p265
    $region34: #{_lambda_.6} parent=5 // pred_check_branch
      %268 = sbr.rel (%p266) target = $region36
    $region35: #{_lambda_.6} parent=5 // pred_region
      %s269 = ssub.s32 %s8, 2
      // Predicated region
      $region37: #{_lambda_.6} parent=35 // pred_check
        %p270 = pneg %p89
      $region38: #{_lambda_.6} parent=35 // pred_check_branch
        %272 = sbr.rel (%p270) target = $region40
      $region39: #{_lambda_.6} parent=35 // pred_region
        %p273 = scmp.lt.s32.totalorder %s14, 1
        %s274 = scalar_select %p273, %s14, 1
        %s275 = smul.addr %s274, 2
        %s276 = smul.addr %s275, 8
        %s277 = scalar_lea.vmem %s2, %s276
      $region40: #{_lambda_.6} parent=35 // pred_fallthru
        _
    $region36: #{_lambda_.6} parent=5 // pred_fallthru
      _
  $region6: #{_lambda_.6} parent=0 // loop_footer
    %s12 = sadd.s32 1, %s8
  $region7: #{_lambda_.6} parent=0 // loop_footer_branch
    %7 = sbr.rel target = $region3
  $region8: #{_lambda_.6} parent=0 // loop_exit
    _

// kernel: _lambda_.7
$region0: #{_lambda_.7}
  #allocation0 [shape = 'u32[]', space=smem, size = 0x4, offset = 0x4, fixed_abs, tag = 'smem constant byte address 0x4 - core index']
  #allocation1 [shape = 'u32[144,128]{1,0:T(1,128)}', space=vmem, size = 0x12000, scoped, tag = 'internal scratch']
  %s0 = inlined_call_operand.vmem [shape: f32[2,16,128], index: 0, kind: input, shape index: {}]
  %s1 = inlined_call_operand.vmem [shape: f32[2,16,128], index: 1, kind: input, shape index: {}]
  %s2 = inlined_call_operand.vmem [shape: f32[2,16,128], index: 2, kind: output, shape index: {}]
  %s3 = sld [smem:[#allocation0]]
  $region41: #{_lambda_.7} parent=0
    _
  %s5 = ssub.s32 1, %s3
  %s6 = scalar_select 0, %s5, %s3
  loop: start=0, step=1, limit=4
  $region2: #{_lambda_.7} parent=0 // loop_pre_header
    _
  $region3: #{_lambda_.7} parent=0 // loop_header
    %s8 = sphi 0, %s12
    %p9 = scmp.ge.s32.totalorder %s8, 4
    %s18 = sphi 0, %s20
    %s21 = sphi 0, %s18
    %s22 = sphi 0, %s21
    %s38 = sphi 0, %s22
    %s44 = sphi 0, %s46
    %s47 = sphi 0, %s44
    %s48 = sphi 0, %s47
    %s64 = sphi 0, %s48
    %s70 = sphi 0, %s72
    %s73 = sphi 0, %s70
    %s74 = sphi 0, %s73
    %s90 = sphi 0, %s74
  $region4: #{_lambda_.7} parent=0 // loop_header_branch
    %11 = sbr.rel (%p9) target = $region8
  $region5: #{_lambda_.7} parent=0 // loop_body
    %s13 = ssub.s32 %s8, 1
    %s14 = ssub.s32 %s8, 2
    %s15 = sadd.s32 %s8, 1
    %s16 = ssub.s32 %s8, %s15
    %p17 = scmp.eq.s32.totalorder %s16, 0
    %s19 = sadd.s32 %s18, 1
    %s20 = scalar_select %p17, %s18, %s19
    %p23 = pneg %p17
    %p24 = scmp.eq.s32.totalorder %s8, 1
    %p25 = por %p23, %p24
    %p26 = scmp.ne.s32.totalorder %s18, %s21
    %p27 = scmp.eq.s32.totalorder %s8, 0
    %p28 = por %p26, %p27
    %p29 = scmp.ne.s32.totalorder %s18, %s21
    %p30 = scmp.eq.s32.totalorder %s13, 1
    %p31 = por %p29, %p30
    %p32 = scmp.ne.s32.totalorder %s21, %s22
    %p33 = scmp.eq.s32.totalorder %s13, 0
    %p34 = por %p32, %p33
    %p35 = scmp.ne.s32.totalorder %s21, %s22
    %p36 = scmp.eq.s32.totalorder %s14, 1
    %p37 = por %p35, %p36
    %p39 = scmp.ne.s32.totalorder %s22, %s38
    %p40 = scmp.eq.s32.totalorder %s14, 0
    %p41 = por %p39, %p40
    %s42 = ssub.s32 %s8, %s15
    %p43 = scmp.eq.s32.totalorder %s42, 0
    %s45 = sadd.s32 %s44, 1
    %s46 = scalar_select %p43, %s44, %s45
    %p49 = pneg %p43
    %p50 = scmp.eq.s32.totalorder %s8, 1
    %p51 = por %p49, %p50
    %p52 = scmp.ne.s32.totalorder %s44, %s47
    %p53 = scmp.eq.s32.totalorder %s8, 0
    %p54 = por %p52, %p53
    %p55 = scmp.ne.s32.totalorder %s44, %s47
    %p56 = scmp.eq.s32.totalorder %s13, 1
    %p57 = por %p55, %p56
    %p58 = scmp.ne.s32.totalorder %s47, %s48
    %p59 = scmp.eq.s32.totalorder %s13, 0
    %p60 = por %p58, %p59
    %p61 = scmp.ne.s32.totalorder %s47, %s48
    %p62 = scmp.eq.s32.totalorder %s14, 1
    %p63 = por %p61, %p62
    %p65 = scmp.ne.s32.totalorder %s48, %s64
    %p66 = scmp.eq.s32.totalorder %s14, 0
    %p67 = por %p65, %p66
    %s68 = ssub.s32 %s8, %s15
    %p69 = scmp.eq.s32.totalorder %s68, 0
    %s71 = sadd.s32 %s70, 1
    %s72 = scalar_select %p69, %s70, %s71
    %p75 = pneg %p69
    %p76 = scmp.eq.s32.totalorder %s8, 1
    %p77 = por %p75, %p76
    %p78 = scmp.ne.s32.totalorder %s70, %s73
    %p79 = scmp.eq.s32.totalorder %s8, 0
    %p80 = por %p78, %p79
    %p81 = scmp.ne.s32.totalorder %s70, %s73
    %p82 = scmp.eq.s32.totalorder %s13, 1
    %p83 = por %p81, %p82
    %p84 = scmp.ne.s32.totalorder %s73, %s74
    %p85 = scmp.eq.s32.totalorder %s13, 0
    %p86 = por %p84, %p85
    %p87 = scmp.ne.s32.totalorder %s73, %s74
    %p88 = scmp.eq.s32.totalorder %s14, 1
    %p89 = por %p87, %p88
    %p91 = scmp.ne.s32.totalorder %s74, %s90
    %p92 = scmp.eq.s32.totalorder %s14, 0
    %p93 = por %p91, %p92
    %p94 = scmp.le.s32.totalorder 1, %s8
    %p95 = scmp.lt.s32.totalorder %s8, 3
    %p96 = pnand %p94, %p95
    %p97 = pneg %p96
    // Predicated region
    $region9: #{_lambda_.7} parent=5 // pred_check
      _
    $region10: #{_lambda_.7} parent=5 // pred_check_branch
      %99 = sbr.rel (%p96) target = $region12
    $region11: #{_lambda_.7} parent=5 // pred_region
      %s100 = ssub.s32 %s8, 1
    $region12: #{_lambda_.7} parent=5 // pred_fallthru
      _
    %p101 = scmp.lt.s32.totalorder %s8, 2
    // Predicated region
    $region13: #{_lambda_.7} parent=5 // pred_check
      %p102 = pneg %p101
    $region14: #{_lambda_.7} parent=5 // pred_check_branch
      %104 = sbr.rel (%p102) target = $region16
    $region15: #{_lambda_.7} parent=5 // pred_region
      // Predicated region
      $region17: #{_lambda_.7} parent=15 // pred_check
        %p105 = pneg %p28
      $region18: #{_lambda_.7} parent=15 // pred_check_branch
        %107 = sbr.rel (%p105) target = $region20
      $region19: #{_lambda_.7} parent=15 // pred_region
        %p108 = scmp.lt.s32.totalorder %s8, 1
        %s109 = scalar_select %p108, %s8, 1
        %s110 = smul.addr %s109, 2
        %s111 = smul.addr %s110, 8
        %s112 = scalar_lea.vmem %s0, %s111
      $region20: #{_lambda_.7} parent=15 // pred_fallthru
        _
      // Predicated region
      $region21: #{_lambda_.7} parent=15 // pred_check
        %p113 = pneg %p54
      $region22: #{_lambda_.7} parent=15 // pred_check_branch
        %115 = sbr.rel (%p113) target = $region24
      $region23: #{_lambda_.7} parent=15 // pred_region
        %p116 = scmp.lt.s32.totalorder %s8, 1
        %s117 = scalar_select %p116, %s8, 1
        %s118 = smul.addr %s117, 2
        %s119 = smul.addr %s118, 8
        %s120 = scalar_lea.vmem %s1, %s119
      $region24: #{_lambda_.7} parent=15 // pred_fallthru
        _
    $region16: #{_lambda_.7} parent=5 // pred_fallthru
      _
    %p121 = scmp.le.s32.totalorder 1, %s8
    %p122 = scmp.lt.s32.totalorder %s8, 3
    %p123 = pnand %p121, %p122
    %p124 = pneg %p123
    // Predicated region
    $region25: #{_lambda_.7} parent=5 // pred_check
      _
    $region26: #{_lambda_.7} parent=5 // pred_check_branch
      %126 = sbr.rel (%p123) target = $region28
    $region27: #{_lambda_.7} parent=5 // pred_region
      %s127 = ssub.s32 %s8, 1
      %p128 = scmp.lt.s32.totalorder %s13, 1
      %s129 = scalar_select %p128, %s13, 1
      %s130 = smul.addr %s129, 2
      %s131 = smul.addr %s130, 8
      %s132 = scalar_lea.vmem %s0, %s131
      %p133 = pneg %p34
      %p134 = pneg %p31
      %p135 = scmp.lt.s32.totalorder %s13, 1
      %s136 = scalar_select %p135, %s13, 1
      %s137 = smul.addr %s136, 2
      %s138 = smul.addr %s137, 8
      %s139 = scalar_lea.vmem %s1, %s138
      %p140 = pneg %p60
      %p141 = pneg %p57
      %p142 = pneg %p86
      %p143 = pneg %p83
      %p144 = scmp.lt.s32.totalorder %s13, 1
      %s145 = scalar_select %p144, %s13, 1
      %s146 = smul.addr %s145, 2
      %s147 = smul.addr %s146, 8
      %s148 = scalar_lea.vmem %s2, %s147
      %p149 = scmp.lt.s32.totalorder %s13, 1
      %s150 = scalar_select %p149, %s13, 1
      %s151 = smul.addr %s150, 2
      %s152 = smul.addr %s151, 8
      %s153 = scalar_lea.vmem %s0, %s152
      %p154 = scmp.lt.s32.totalorder %s13, 1
      %s155 = scalar_select %p154, %s13, 1
      %s156 = smul.addr %s155, 2
      %s157 = smul.addr %s156, 8
      %s158 = scalar_lea.vmem %s1, %s157
      %p159 = scmp.lt.s32.totalorder %s13, 1
      %s160 = scalar_select %p159, %s13, 1
      %s161 = smul.addr %s160, 2
      %s162 = smul.addr %s161, 8
      %s163 = scalar_lea.vmem %s2, %s162
      %v164 = vlaneseq
      %v165 = vshrl.u32 %v164, 7
      %v166 = vadd.s32 %v165, 8
      %v167 = vlaneseq
      %v168 = vand.u32 %v167, 127
      %vm169 = vcmp.eq.s32.totalorder %v165, 0
      %vm170 = vcmp.eq.s32.totalorder %v166, 0
      %v171 = vsel %vm169, 1, 0
      %v172 = vsel %vm170, 1, 0
      %v173 = vsub.s32 3, %v171
      %v174 = vsub.s32 3, %v172
      %vm175 = vcmp.eq.s32.totalorder %v165, 15
      %vm176 = vcmp.eq.s32.totalorder %v166, 15
      %v177 = vsel %vm175, 1, 0
      %v178 = vsel %vm176, 1, 0
      %v179 = vsub.s32 %v173, %v177
      %v180 = vsub.s32 %v174, %v178
      %vm181 = vcmp.lt.s32.totalorder %v168, 8
      %v182 = vsel %vm181, 1, 0
      %v183 = vsub.s32 3, %v182
      %vm184 = vcmp.ge.s32.totalorder %v168, 120
      %v185 = vsel %vm184, 1, 0
      %v186 = vsub.s32 %v183, %v185
      %vm187 = vcmp.eq.s32.totalorder %v179, 3
      %vm188 = vcmp.eq.s32.totalorder %v180, 3
      %vm189 = vcmp.eq.s32.totalorder %v179, 2
      %vm190 = vcmp.eq.s32.totalorder %v180, 2
      %v191 = vsel %vm189, 0.5, 1.0
      %v192 = vsel %vm190, 0.5, 1.0
      %v193 = vsel %vm187, 0.33333334, %v191
      %v194 = vsel %vm188, 0.33333334, %v192
      %vm195 = vcmp.eq.s32.totalorder %v186, 3
      %vm196 = vcmp.eq.s32.totalorder %v186, 2
      %v197 = vsel %vm196, 0.5, 1.0
      %v198 = vsel %vm195, 0.33333334, %v197
      %v199 = vmul.f32 %v193, %v198
      %v200 = vmul.f32 %v194, %v198
      %v201 = vld [vmem:[%s153] sm:$0xff]
      %v202 = vld [vmem:[%s153 + $0x8] sm:$0xff]
      %v203 = vrot.slane %v201, 7
      %v204 = vrot.slane %v202, 7
      %vm205 = vcmp.lt.s32.totalorder %v165, 1
      %v206 = vsel %vm205, %v203, %v204
      %v207 = vsel %vm205, %v204, %v203
      %208 = vrot.lane.b32.xlu0 %v207, 8
      %v209 = vpop.permute.xlu0 %208
      %210 = vrot.lane.b32.xlu0 %v206, 8
      %v211 = vpop.permute.xlu0 %210
      %vm212 = vcmp.ge.s32.totalorder %v165, 1
      %vm213 = vcmp.ge.s32.totalorder %v166, 1
      %vm214 = vcmp.ge.s32.totalorder %v168, 8
      %vm215 = vmand %vm212, %vm214
      %vm216 = vmand %vm213, %vm214
      %v217 = vsel %vm215, %v209, 0.0
      %v218 = vsel %vm216, %v211, 0.0
      %v219 = vsel %vm212, %v207, 0.0
      %v220 = vsel %vm213, %v206, 0.0
      %v221 = vadd.f32 %v217, %v219
      %v222 = vadd.f32 %v218, %v220
      %223 = vrot.lane.b32.xlu0 %v207, 120
      %v224 = vpop.permute.xlu0 %223
      %225 = vrot.lane.b32.xlu0 %v206, 120
      %v226 = vpop.permute.xlu0 %225
      %vm227 = vcmp.lt.s32.totalorder %v168, 120
      %vm228 = vmand %vm212, %vm227
      %vm229 = vmand %vm213, %vm227
      %v230 = vsel %vm228, %v224, 0.0
      %v231 = vsel %vm229, %v226, 0.0
      %v232 = vadd.f32 %v221, %v230
      %v233 = vadd.f32 %v222, %v231
      %234 = vrot.lane.b32.xlu0 %v201, 8
      %v235 = vpop.permute.xlu0 %234
      %236 = vrot.lane.b32.xlu0 %v202, 8
      %v237 = vpop.permute.xlu0 %236
      %v238 = vsel %vm214, %v235, 0.0
      %v239 = vsel %vm214, %v237, 0.0
      %v240 = vadd.f32 %v232, %v238
      %v241 = vadd.f32 %v233, %v239
      %v242 = vadd.f32 %v240, %v201
      %v243 = vadd.f32 %v241, %v202
      %244 = vrot.lane.b32.xlu0 %v201, 120
      %v245 = vpop.permute.xlu0 %244
      %246 = vrot.lane.b32.xlu0 %v202, 120
      %v247 = vpop.permute.xlu0 %246
      %v248 = vsel %vm227, %v245, 0.0
      %v249 = vsel %vm227, %v247, 0.0
      %v250 = vadd.f32 %v242, %v248
      %v251 = vadd.f32 %v243, %v249
      %v252 = vrot.slane %v201, 1
      %v253 = vrot.slane %v202, 1
      %vm254 = vcmp.lt.s32.totalorder %v165, 7
      %v255 = vsel %vm254, %v252, %v253
      %v256 = vsel %vm254, %v253, %v252
      %257 = vrot.lane.b32.xlu0 %v255, 8
      %v258 = vpop.permute.xlu0 %257
      %259 = vrot.lane.b32.xlu0 %v256, 8
      %v260 = vpop.permute.xlu0 %259
      %vm261 = vcmp.lt.s32.totalorder %v165, 15
      %vm262 = vcmp.lt.s32.totalorder %v166, 15
      %vm263 = vmand %vm261, %vm214
      %vm264 = vmand %vm262, %vm214
      %v265 = vsel %vm263, %v258, 0.0
      %v266 = vsel %vm264, %v260, 0.0
      %v267 = vadd.f32 %v250, %v265
      %v268 = vadd.f32 %v251, %v266
      %v269 = vsel %vm261, %v255, 0.0
      %v270 = vsel %vm262, %v256, 0.0
      %v271 = vadd.f32 %v267, %v269
      %v272 = vadd.f32 %v268, %v270
      %273 = vrot.lane.b32.xlu0 %v255, 120
      %v274 = vpop.permute.xlu0 %273
      %275 = vrot.lane.b32.xlu0 %v256, 120
      %v276 = vpop.permute.xlu0 %275
      %vm277 = vmand %vm261, %vm227
      %vm278 = vmand %vm262, %vm227
      %v279 = vsel %vm277, %v274, 0.0
      %v280 = vsel %vm278, %v276, 0.0
      %v281 = vadd.f32 %v271, %v279
      %v282 = vadd.f32 %v272, %v280
      %v283 = vmul.f32 %v281, %v199
      %v284 = vmul.f32 %v282, %v200
      %v285 = vld [vmem:[%s158] sm:$0xff]
      %v286 = vld [vmem:[%s158 + $0x8] sm:$0xff]
      %v287 = vadd.f32 %v283, %v285
      %v288 = vadd.f32 %v284, %v286
      %289 = vst [vmem:[%s163] sm:$0xff] %v287
      %290 = vst [vmem:[%s163 + $0x8] sm:$0xff] %v288
      %p291 = scmp.lt.s32.totalorder %s13, 1
      %s292 = scalar_select %p291, %s13, 1
      %s293 = smul.addr %s292, 2
      %s294 = smul.addr %s293, 8
      %s295 = scalar_lea.vmem %s2, %s294
      // Predicated region
      $region29: #{_lambda_.7} parent=27 // pred_check
        %p296 = pneg %p83
      $region30: #{_lambda_.7} parent=27 // pred_check_branch
        %298 = sbr.rel (%p296) target = $region32
      $region31: #{_lambda_.7} parent=27 // pred_region
        _
      $region32: #{_lambda_.7} parent=27 // pred_fallthru
        _
    $region28: #{_lambda_.7} parent=5 // pred_fallthru
      _
    %p299 = scmp.le.s32.totalorder 2, %s8
    // Predicated region
    $region33: #{_lambda_.7} parent=5 // pred_check
      %p300 = pneg %p299
    $region34: #{_lambda_.7} parent=5 // pred_check_branch
      %302 = sbr.rel (%p300) target = $region36
    $region35: #{_lambda_.7} parent=5 // pred_region
      %s303 = ssub.s32 %s8, 2
      // Predicated region
      $region37: #{_lambda_.7} parent=35 // pred_check
        %p304 = pneg %p89
      $region38: #{_lambda_.7} parent=35 // pred_check_branch
        %306 = sbr.rel (%p304) target = $region40
      $region39: #{_lambda_.7} parent=35 // pred_region
        %p307 = scmp.lt.s32.totalorder %s14, 1
        %s308 = scalar_select %p307, %s14, 1
        %s309 = smul.addr %s308, 2
        %s310 = smul.addr %s309, 8
        %s311 = scalar_lea.vmem %s2, %s310
      $region40: #{_lambda_.7} parent=35 // pred_fallthru
        _
    $region36: #{_lambda_.7} parent=5 // pred_fallthru
      _
  $region6: #{_lambda_.7} parent=0 // loop_footer
    %s12 = sadd.s32 1, %s8
  $region7: #{_lambda_.7} parent=0 // loop_footer_branch
    %7 = sbr.rel target = $region3
  $region8: #{_lambda_.7} parent=0 // loop_exit
    _

// kernel: _lambda_.5
$region0: #{_lambda_.5}
  #allocation0 [shape = 'u32[]', space=smem, size = 0x4, offset = 0x4, fixed_abs, tag = 'smem constant byte address 0x4 - core index']
  #allocation1 [shape = 'u32[144,128]{1,0:T(1,128)}', space=vmem, size = 0x12000, scoped, tag = 'internal scratch']
  %s0 = inlined_call_operand.vmem [shape: f32[2,4,16,16], index: 0, kind: input, shape index: {}]
  %s1 = inlined_call_operand.vmem [shape: f32[4,16,128], index: 1, kind: input, shape index: {}]
  %s2 = inlined_call_operand.vmem [shape: f32[1,128], index: 2, kind: input, shape index: {}]
  %s3 = inlined_call_operand.vmem [shape: f32[2,16,128], index: 3, kind: output, shape index: {}]
  %s4 = sld [smem:[#allocation0]]
  $region45: #{_lambda_.5} parent=0
    _
  %s6 = ssub.s32 1, %s4
  %s7 = scalar_select 0, %s6, %s4
  loop: start=0, step=1, limit=4
  $region2: #{_lambda_.5} parent=0 // loop_pre_header
    _
  $region3: #{_lambda_.5} parent=0 // loop_header
    %s9 = sphi 0, %s13
    %p10 = scmp.ge.s32.totalorder %s9, 4
    %s19 = sphi 0, %s21
    %s22 = sphi 0, %s19
    %s23 = sphi 0, %s22
    %s39 = sphi 0, %s23
    %s43 = sphi 0, %s43
    %s45 = sphi 0, %s43
    %s46 = sphi 0, %s45
    %s60 = sphi 0, %s46
    %s64 = sphi 0, %s64
    %s66 = sphi 0, %s64
    %s67 = sphi 0, %s66
    %s81 = sphi 0, %s67
    %s87 = sphi 0, %s89
    %s90 = sphi 0, %s87
    %s91 = sphi 0, %s90
    %s107 = sphi 0, %s91
  $region4: #{_lambda_.5} parent=0 // loop_header_branch
    %12 = sbr.rel (%p10) target = $region8
  $region5: #{_lambda_.5} parent=0 // loop_body
    %s14 = ssub.s32 %s9, 1
    %s15 = ssub.s32 %s9, 2
    %s16 = sadd.s32 %s9, 1
    %s17 = ssub.s32 %s9, %s16
    %p18 = scmp.eq.s32.totalorder %s17, 0
    %s20 = sadd.s32 %s19, 1
    %s21 = scalar_select %p18, %s19, %s20
    %p24 = pneg %p18
    %p25 = scmp.eq.s32.totalorder %s9, 1
    %p26 = por %p24, %p25
    %p27 = scmp.ne.s32.totalorder %s19, %s22
    %p28 = scmp.eq.s32.totalorder %s9, 0
    %p29 = por %p27, %p28
    %p30 = scmp.ne.s32.totalorder %s19, %s22
    %p31 = scmp.eq.s32.totalorder %s14, 1
    %p32 = por %p30, %p31
    %p33 = scmp.ne.s32.totalorder %s22, %s23
    %p34 = scmp.eq.s32.totalorder %s14, 0
    %p35 = por %p33, %p34
    %p36 = scmp.ne.s32.totalorder %s22, %s23
    %p37 = scmp.eq.s32.totalorder %s15, 1
    %p38 = por %p36, %p37
    %p40 = scmp.ne.s32.totalorder %s23, %s39
    %p41 = scmp.eq.s32.totalorder %s15, 0
    %p42 = por %p40, %p41
    %s44 = sadd.s32 %s43, 1
    %p47 = scmp.eq.s32.totalorder %s9, 1
    %p48 = scmp.ne.s32.totalorder %s43, %s45
    %p49 = scmp.eq.s32.totalorder %s9, 0
    %p50 = por %p48, %p49
    %p51 = scmp.ne.s32.totalorder %s43, %s45
    %p52 = scmp.eq.s32.totalorder %s14, 1
    %p53 = por %p51, %p52
    %p54 = scmp.ne.s32.totalorder %s45, %s46
    %p55 = scmp.eq.s32.totalorder %s14, 0
    %p56 = por %p54, %p55
    %p57 = scmp.ne.s32.totalorder %s45, %s46
    %p58 = scmp.eq.s32.totalorder %s15, 1
    %p59 = por %p57, %p58
    %p61 = scmp.ne.s32.totalorder %s46, %s60
    %p62 = scmp.eq.s32.totalorder %s15, 0
    %p63 = por %p61, %p62
    %s65 = sadd.s32 %s64, 1
    %p68 = scmp.eq.s32.totalorder %s9, 1
    %p69 = scmp.ne.s32.totalorder %s64, %s66
    %p70 = scmp.eq.s32.totalorder %s9, 0
    %p71 = por %p69, %p70
    %p72 = scmp.ne.s32.totalorder %s64, %s66
    %p73 = scmp.eq.s32.totalorder %s14, 1
    %p74 = por %p72, %p73
    %p75 = scmp.ne.s32.totalorder %s66, %s67
    %p76 = scmp.eq.s32.totalorder %s14, 0
    %p77 = por %p75, %p76
    %p78 = scmp.ne.s32.totalorder %s66, %s67
    %p79 = scmp.eq.s32.totalorder %s15, 1
    %p80 = por %p78, %p79
    %p82 = scmp.ne.s32.totalorder %s67, %s81
    %p83 = scmp.eq.s32.totalorder %s15, 0
    %p84 = por %p82, %p83
    %s85 = ssub.s32 %s9, %s16
    %p86 = scmp.eq.s32.totalorder %s85, 0
    %s88 = sadd.s32 %s87, 1
    %s89 = scalar_select %p86, %s87, %s88
    %p92 = pneg %p86
    %p93 = scmp.eq.s32.totalorder %s9, 1
    %p94 = por %p92, %p93
    %p95 = scmp.ne.s32.totalorder %s87, %s90
    %p96 = scmp.eq.s32.totalorder %s9, 0
    %p97 = por %p95, %p96
    %p98 = scmp.ne.s32.totalorder %s87, %s90
    %p99 = scmp.eq.s32.totalorder %s14, 1
    %p100 = por %p98, %p99
    %p101 = scmp.ne.s32.totalorder %s90, %s91
    %p102 = scmp.eq.s32.totalorder %s14, 0
    %p103 = por %p101, %p102
    %p104 = scmp.ne.s32.totalorder %s90, %s91
    %p105 = scmp.eq.s32.totalorder %s15, 1
    %p106 = por %p104, %p105
    %p108 = scmp.ne.s32.totalorder %s91, %s107
    %p109 = scmp.eq.s32.totalorder %s15, 0
    %p110 = por %p108, %p109
    %p111 = scmp.le.s32.totalorder 1, %s9
    %p112 = scmp.lt.s32.totalorder %s9, 3
    %p113 = pnand %p111, %p112
    %p114 = pneg %p113
    // Predicated region
    $region9: #{_lambda_.5} parent=5 // pred_check
      _
    $region10: #{_lambda_.5} parent=5 // pred_check_branch
      %116 = sbr.rel (%p113) target = $region12
    $region11: #{_lambda_.5} parent=5 // pred_region
      %s117 = ssub.s32 %s9, 1
      // Predicated region
      $region13: #{_lambda_.5} parent=11 // pred_check
        %p118 = pneg %p56
      $region14: #{_lambda_.5} parent=11 // pred_check_branch
        %120 = sbr.rel (%p118) target = $region16
      $region15: #{_lambda_.5} parent=11 // pred_region
        _
      $region16: #{_lambda_.5} parent=11 // pred_fallthru
        _
      // Predicated region
      $region17: #{_lambda_.5} parent=11 // pred_check
        %p121 = pneg %p77
      $region18: #{_lambda_.5} parent=11 // pred_check_branch
        %123 = sbr.rel (%p121) target = $region20
      $region19: #{_lambda_.5} parent=11 // pred_region
        _
      $region20: #{_lambda_.5} parent=11 // pred_fallthru
        _
    $region12: #{_lambda_.5} parent=5 // pred_fallthru
      _
    %p124 = scmp.lt.s32.totalorder %s9, 2
    // Predicated region
    $region21: #{_lambda_.5} parent=5 // pred_check
      %p125 = pneg %p124
    $region22: #{_lambda_.5} parent=5 // pred_check_branch
      %127 = sbr.rel (%p125) target = $region24
    $region23: #{_lambda_.5} parent=5 // pred_region
      // Predicated region
      $region25: #{_lambda_.5} parent=23 // pred_check
        %p128 = pneg %p29
      $region26: #{_lambda_.5} parent=23 // pred_check_branch
        %130 = sbr.rel (%p128) target = $region28
      $region27: #{_lambda_.5} parent=23 // pred_region
        %p131 = scmp.lt.s32.totalorder %s9, 1
        %s132 = scalar_select %p131, %s9, 1
        %s133 = smul.addr %s132, 8
        %s134 = smul.addr %s133, 8
        %s135 = scalar_lea.vmem %s0, %s134
      $region28: #{_lambda_.5} parent=23 // pred_fallthru
        _
    $region24: #{_lambda_.5} parent=5 // pred_fallthru
      _
    %p136 = scmp.le.s32.totalorder 1, %s9
    %p137 = scmp.lt.s32.totalorder %s9, 3
    %p138 = pnand %p136, %p137
    %p139 = pneg %p138
    // Predicated region
    $region29: #{_lambda_.5} parent=5 // pred_check
      _
    $region30: #{_lambda_.5} parent=5 // pred_check_branch
      %141 = sbr.rel (%p138) target = $region32
    $region31: #{_lambda_.5} parent=5 // pred_region
      %s142 = ssub.s32 %s9, 1
      %p143 = scmp.lt.s32.totalorder %s14, 1
      %s144 = scalar_select %p143, %s14, 1
      %s145 = smul.addr %s144, 8
      %s146 = smul.addr %s145, 8
      %s147 = scalar_lea.vmem %s0, %s146
      %p148 = pneg %p35
      %p149 = pneg %p32
      %p150 = pneg %p56
      %p151 = pneg %p53
      %p152 = pneg %p77
      %p153 = pneg %p74
      %p154 = pneg %p103
      %p155 = pneg %p100
      %p156 = scmp.lt.s32.totalorder %s14, 1
      %s157 = scalar_select %p156, %s14, 1
      %s158 = smul.addr %s157, 2
      %s159 = smul.addr %s158, 8
      %s160 = scalar_lea.vmem %s3, %s159
      %p161 = scmp.lt.s32.totalorder %s14, 1
      %s162 = scalar_select %p161, %s14, 1
      %s163 = smul.addr %s162, 8
      %s164 = smul.addr %s163, 8
      %s165 = scalar_lea.vmem %s0, %s164
      %p166 = scmp.lt.s32.totalorder %s14, 1
      %s167 = scalar_select %p166, %s14, 1
      %s168 = smul.addr %s167, 2
      %s169 = smul.addr %s168, 8
      %s170 = scalar_lea.vmem %s3, %s169
      %v171 = vld [vmem:[%s165] sm:$0xff]
      %v172 = vld [vmem:[%s165 + $0x8] sm:$0xff]
      %v173 = vmax.f32 %v171, 0.0
      %v174 = vmax.f32 %v172, 0.0
      %v175 = vld [vmem:[%s1] sm:$0xff]
      %v176 = vld [vmem:[%s1 + $0x8] sm:$0xff]
      %s177 = scalar_lea.vmem %s165, 16
      %v178 = vld [vmem:[%s177] sm:$0xff]
      %v179 = vld [vmem:[%s177 + $0x8] sm:$0xff]
      %v180 = vmax.f32 %v178, 0.0
      %v181 = vmax.f32 %v179, 0.0
      %s182 = scalar_lea.vmem %s1, 16
      %v183 = vld [vmem:[%s182] sm:$0xff]
      %v184 = vld [vmem:[%s182 + $0x8] sm:$0xff]
      %vm185 = vcmask 130048
      %v187 = vsel %vm185, %v180, 0
      %v190 = vsel %vm185, %v181, 0
      %192 = vmatprep.subr.mxu0 0.0
      %193 = vmatpush1.msra.mxu0 0.0
      %194 = vmatprep.subr.mxu0 0.0
      %195 = vmatpush1.msra.mxu0 0.0
      %196 = vmatprep.subr.mxu0 0.0
      %197 = vmatpush1.msra.mxu0 0.0
      %198 = vmatprep.subr.mxu0 0.0
      %199 = vmatpush1.msra.mxu0 0.0
      %200 = vmatprep.subr.mxu0 0.0
      %201 = vmatpush1.msra.mxu0 0.0
      %202 = vmatprep.subr.mxu0 0.0
      %203 = vmatpush1.msra.mxu0 0.0
      %204 = vmatprep.subr.mxu0 0.0
      %205 = vmatpush1.msra.mxu0 0.0
      %206 = vmatprep.subr.mxu0 0.0
      %207 = vmatpush1.msra.mxu0 0.0
      %208 = vmatprep.subr.mxu0 0.0
      %209 = vmatpush1.msra.mxu0 0.0
      %210 = vmatprep.subr.mxu0 0.0
      %211 = vmatpush1.msra.mxu0 0.0
      %212 = vmatprep.subr.mxu0 0.0
      %213 = vmatpush1.msra.mxu0 0.0
      %214 = vmatprep.subr.mxu0 0.0
      %215 = vmatpush1.msra.mxu0 0.0
      %216 = vmatprep.subr.mxu0 0.0
      %217 = vmatpush1.msra.mxu0 0.0
      %218 = vmatprep.subr.mxu0 0.0
      %219 = vmatpush1.msra.mxu0 0.0
      %220 = vmatprep.subr.mxu0 0.0
      %221 = vmatpush1.msra.mxu0 %v184
      %222 = vmatprep.subr.mxu0 0.0
      %223 = vmatpush1.msra.mxu0 %v183
      %224 = vmatprep.subr.mxu0 0.0
      %225 = vmatpush2.msra.mxu0 0.0
      %226 = vmatprep.subr.mxu0 0.0
      %227 = vmatpush2.msra.mxu0 0.0
      %228 = vmatprep.subr.mxu0 0.0
      %229 = vmatpush2.msra.mxu0 0.0
      %230 = vmatprep.subr.mxu0 0.0
      %231 = vmatpush2.msra.mxu0 0.0
      %232 = vmatprep.subr.mxu0 0.0
      %233 = vmatpush2.msra.mxu0 0.0
      %234 = vmatprep.subr.mxu0 0.0
      %235 = vmatpush2.msra.mxu0 0.0
      %236 = vmatprep.subr.mxu0 0.0
      %237 = vmatpush2.msra.mxu0 0.0
      %238 = vmatprep.subr.mxu0 0.0
      %239 = vmatpush2.msra.mxu0 0.0
      %240 = vmatprep.subr.mxu0 0.0
      %241 = vmatpush2.msra.mxu0 0.0
      %242 = vmatprep.subr.mxu0 0.0
      %243 = vmatpush2.msra.mxu0 0.0
      %244 = vmatprep.subr.mxu0 0.0
      %245 = vmatpush2.msra.mxu0 0.0
      %246 = vmatprep.subr.mxu0 0.0
      %247 = vmatpush2.msra.mxu0 0.0
      %248 = vmatprep.subr.mxu0 0.0
      %249 = vmatpush2.msra.mxu0 0.0
      %250 = vmatprep.subr.mxu0 0.0
      %251 = vmatpush2.msra.mxu0 0.0
      %252 = vmatprep.subr.mxu0 0.0
      %253 = vmatpush2.msra.mxu0 0.0
      %254 = vmatprep.subr.mxu0 0.0
      %255 = vmatpush2.msra.mxu0 0.0
      %256 = vmatprep.mubr.f32.mxu0 0.0
      %257 = vmatmul.mubr.f32.gmra.mxu0 %v187
      %v258 = vpop.f32.mrf.mxu0
      %v259 = vadd.f32 0.0, %v258
      %v260 = vpop.f32.mrf.mxu0
      %261 = vmatprep.mubr.f32.mxu0 0.0
      %262 = vmatmul.mubr.f32.gmra.mxu0 %v190
      %v263 = vpop.f32.mrf.mxu0
      %v264 = vadd.f32 0.0, %v263
      %v265 = vpop.f32.mrf.mxu0
      %266 = vdwg.mxu0
      %v268 = vsel %vm185, %v173, 0
      %v271 = vsel %vm185, %v174, 0
      %273 = vmatprep.subr.mxu0 0.0
      %274 = vmatpush1.msra.mxu0 0.0
      %275 = vmatprep.subr.mxu0 0.0
      %276 = vmatpush1.msra.mxu0 0.0
      %277 = vmatprep.subr.mxu0 0.0
      %278 = vmatpush1.msra.mxu0 0.0
      %279 = vmatprep.subr.mxu0 0.0
      %280 = vmatpush1.msra.mxu0 0.0
      %281 = vmatprep.subr.mxu0 0.0
      %282 = vmatpush1.msra.mxu0 0.0
      %283 = vmatprep.subr.mxu0 0.0
      %284 = vmatpush1.msra.mxu0 0.0
      %285 = vmatprep.subr.mxu0 0.0
      %286 = vmatpush1.msra.mxu0 0.0
      %287 = vmatprep.subr.mxu0 0.0
      %288 = vmatpush1.msra.mxu0 0.0
      %289 = vmatprep.subr.mxu0 0.0
      %290 = vmatpush1.msra.mxu0 0.0
      %291 = vmatprep.subr.mxu0 0.0
      %292 = vmatpush1.msra.mxu0 0.0
      %293 = vmatprep.subr.mxu0 0.0
      %294 = vmatpush1.msra.mxu0 0.0
      %295 = vmatprep.subr.mxu0 0.0
      %296 = vmatpush1.msra.mxu0 0.0
      %297 = vmatprep.subr.mxu0 0.0
      %298 = vmatpush1.msra.mxu0 0.0
      %299 = vmatprep.subr.mxu0 0.0
      %300 = vmatpush1.msra.mxu0 0.0
      %301 = vmatprep.subr.mxu0 0.0
      %302 = vmatpush1.msra.mxu0 %v176
      %303 = vmatprep.subr.mxu0 0.0
      %304 = vmatpush1.msra.mxu0 %v175
      %305 = vmatprep.subr.mxu0 0.0
      %306 = vmatpush2.msra.mxu0 0.0
      %307 = vmatprep.subr.mxu0 0.0
      %308 = vmatpush2.msra.mxu0 0.0
      %309 = vmatprep.subr.mxu0 0.0
      %310 = vmatpush2.msra.mxu0 0.0
      %311 = vmatprep.subr.mxu0 0.0
      %312 = vmatpush2.msra.mxu0 0.0
      %313 = vmatprep.subr.mxu0 0.0
      %314 = vmatpush2.msra.mxu0 0.0
      %315 = vmatprep.subr.mxu0 0.0
      %316 = vmatpush2.msra.mxu0 0.0
      %317 = vmatprep.subr.mxu0 0.0
      %318 = vmatpush2.msra.mxu0 0.0
      %319 = vmatprep.subr.mxu0 0.0
      %320 = vmatpush2.msra.mxu0 0.0
      %321 = vmatprep.subr.mxu0 0.0
      %322 = vmatpush2.msra.mxu0 0.0
      %323 = vmatprep.subr.mxu0 0.0
      %324 = vmatpush2.msra.mxu0 0.0
      %325 = vmatprep.subr.mxu0 0.0
      %326 = vmatpush2.msra.mxu0 0.0
      %327 = vmatprep.subr.mxu0 0.0
      %328 = vmatpush2.msra.mxu0 0.0
      %329 = vmatprep.subr.mxu0 0.0
      %330 = vmatpush2.msra.mxu0 0.0
      %331 = vmatprep.subr.mxu0 0.0
      %332 = vmatpush2.msra.mxu0 0.0
      %333 = vmatprep.subr.mxu0 0.0
      %334 = vmatpush2.msra.mxu0 0.0
      %335 = vmatprep.subr.mxu0 0.0
      %336 = vmatpush2.msra.mxu0 0.0
      %337 = vmatprep.mubr.f32.mxu0 0.0
      %338 = vmatmul.mubr.f32.gmra.mxu0 %v268
      %v339 = vpop.f32.mrf.mxu0
      %v340 = vadd.f32 %v259, %v339
      %v341 = vpop.f32.mrf.mxu0
      %342 = vmatprep.mubr.f32.mxu0 0.0
      %343 = vmatmul.mubr.f32.gmra.mxu0 %v271
      %v344 = vpop.f32.mrf.mxu0
      %v345 = vadd.f32 %v264, %v344
      %v346 = vpop.f32.mrf.mxu0
      %347 = vdwg.mxu0
      %s348 = scalar_lea.vmem %s165, 32
      %v349 = vld [vmem:[%s348] sm:$0xff]
      %v350 = vld [vmem:[%s348 + $0x8] sm:$0xff]
      %v351 = vmax.f32 %v349, 0.0
      %v352 = vmax.f32 %v350, 0.0
      %s353 = scalar_lea.vmem %s1, 32
      %v354 = vld [vmem:[%s353] sm:$0xff]
      %v355 = vld [vmem:[%s353 + $0x8] sm:$0xff]
      %v357 = vsel %vm185, %v351, 0
      %v360 = vsel %vm185, %v352, 0
      %362 = vmatprep.subr.mxu0 0.0
      %363 = vmatpush1.msra.mxu0 0.0
      %364 = vmatprep.subr.mxu0 0.0
      %365 = vmatpush1.msra.mxu0 0.0
      %366 = vmatprep.subr.mxu0 0.0
      %367 = vmatpush1.msra.mxu0 0.0
      %368 = vmatprep.subr.mxu0 0.0
      %369 = vmatpush1.msra.mxu0 0.0
      %370 = vmatprep.subr.mxu0 0.0
      %371 = vmatpush1.msra.mxu0 0.0
      %372 = vmatprep.subr.mxu0 0.0
      %373 = vmatpush1.msra.mxu0 0.0
      %374 = vmatprep.subr.mxu0 0.0
      %375 = vmatpush1.msra.mxu0 0.0
      %376 = vmatprep.subr.mxu0 0.0
      %377 = vmatpush1.msra.mxu0 0.0
      %378 = vmatprep.subr.mxu0 0.0
      %379 = vmatpush1.msra.mxu0 0.0
      %380 = vmatprep.subr.mxu0 0.0
      %381 = vmatpush1.msra.mxu0 0.0
      %382 = vmatprep.subr.mxu0 0.0
      %383 = vmatpush1.msra.mxu0 0.0
      %384 = vmatprep.subr.mxu0 0.0
      %385 = vmatpush1.msra.mxu0 0.0
      %386 = vmatprep.subr.mxu0 0.0
      %387 = vmatpush1.msra.mxu0 0.0
      %388 = vmatprep.subr.mxu0 0.0
      %389 = vmatpush1.msra.mxu0 0.0
      %390 = vmatprep.subr.mxu0 0.0
      %391 = vmatpush1.msra.mxu0 %v355
      %392 = vmatprep.subr.mxu0 0.0
      %393 = vmatpush1.msra.mxu0 %v354
      %394 = vmatprep.subr.mxu0 0.0
      %395 = vmatpush2.msra.mxu0 0.0
      %396 = vmatprep.subr.mxu0 0.0
      %397 = vmatpush2.msra.mxu0 0.0
      %398 = vmatprep.subr.mxu0 0.0
      %399 = vmatpush2.msra.mxu0 0.0
      %400 = vmatprep.subr.mxu0 0.0
      %401 = vmatpush2.msra.mxu0 0.0
      %402 = vmatprep.subr.mxu0 0.0
      %403 = vmatpush2.msra.mxu0 0.0
      %404 = vmatprep.subr.mxu0 0.0
      %405 = vmatpush2.msra.mxu0 0.0
      %406 = vmatprep.subr.mxu0 0.0
      %407 = vmatpush2.msra.mxu0 0.0
      %408 = vmatprep.subr.mxu0 0.0
      %409 = vmatpush2.msra.mxu0 0.0
      %410 = vmatprep.subr.mxu0 0.0
      %411 = vmatpush2.msra.mxu0 0.0
      %412 = vmatprep.subr.mxu0 0.0
      %413 = vmatpush2.msra.mxu0 0.0
      %414 = vmatprep.subr.mxu0 0.0
      %415 = vmatpush2.msra.mxu0 0.0
      %416 = vmatprep.subr.mxu0 0.0
      %417 = vmatpush2.msra.mxu0 0.0
      %418 = vmatprep.subr.mxu0 0.0
      %419 = vmatpush2.msra.mxu0 0.0
      %420 = vmatprep.subr.mxu0 0.0
      %421 = vmatpush2.msra.mxu0 0.0
      %422 = vmatprep.subr.mxu0 0.0
      %423 = vmatpush2.msra.mxu0 0.0
      %424 = vmatprep.subr.mxu0 0.0
      %425 = vmatpush2.msra.mxu0 0.0
      %426 = vmatprep.mubr.f32.mxu0 0.0
      %427 = vmatmul.mubr.f32.gmra.mxu0 %v357
      %v428 = vpop.f32.mrf.mxu0
      %v429 = vadd.f32 0.0, %v428
      %v430 = vpop.f32.mrf.mxu0
      %431 = vmatprep.mubr.f32.mxu0 0.0
      %432 = vmatmul.mubr.f32.gmra.mxu0 %v360
      %v433 = vpop.f32.mrf.mxu0
      %v434 = vadd.f32 0.0, %v433
      %v435 = vpop.f32.mrf.mxu0
      %436 = vdwg.mxu0
      %v437 = vadd.f32 %v340, %v429
      %v438 = vadd.f32 %v345, %v434
      %s439 = scalar_lea.vmem %s165, 48
      %v440 = vld [vmem:[%s439] sm:$0xff]
      %v441 = vld [vmem:[%s439 + $0x8] sm:$0xff]
      %v442 = vmax.f32 %v440, 0.0
      %v443 = vmax.f32 %v441, 0.0
      %s444 = scalar_lea.vmem %s1, 48
      %v445 = vld [vmem:[%s444] sm:$0xff]
      %v446 = vld [vmem:[%s444 + $0x8] sm:$0xff]
      %v448 = vsel %vm185, %v442, 0
      %v451 = vsel %vm185, %v443, 0
      %453 = vmatprep.subr.mxu0 0.0
      %454 = vmatpush1.msra.mxu0 0.0
      %455 = vmatprep.subr.mxu0 0.0
      %456 = vmatpush1.msra.mxu0 0.0
      %457 = vmatprep.subr.mxu0 0.0
      %458 = vmatpush1.msra.mxu0 0.0
      %459 = vmatprep.subr.mxu0 0.0
      %460 = vmatpush1.msra.mxu0 0.0
      %461 = vmatprep.subr.mxu0 0.0
      %462 = vmatpush1.msra.mxu0 0.0
      %463 = vmatprep.subr.mxu0 0.0
      %464 = vmatpush1.msra.mxu0 0.0
      %465 = vmatprep.subr.mxu0 0.0
      %466 = vmatpush1.msra.mxu0 0.0
      %467 = vmatprep.subr.mxu0 0.0
      %468 = vmatpush1.msra.mxu0 0.0
      %469 = vmatprep.subr.mxu0 0.0
      %470 = vmatpush1.msra.mxu0 0.0
      %471 = vmatprep.subr.mxu0 0.0
      %472 = vmatpush1.msra.mxu0 0.0
      %473 = vmatprep.subr.mxu0 0.0
      %474 = vmatpush1.msra.mxu0 0.0
      %475 = vmatprep.subr.mxu0 0.0
      %476 = vmatpush1.msra.mxu0 0.0
      %477 = vmatprep.subr.mxu0 0.0
      %478 = vmatpush1.msra.mxu0 0.0
      %479 = vmatprep.subr.mxu0 0.0
      %480 = vmatpush1.msra.mxu0 0.0
      %481 = vmatprep.subr.mxu0 0.0
      %482 = vmatpush1.msra.mxu0 %v446
      %483 = vmatprep.subr.mxu0 0.0
      %484 = vmatpush1.msra.mxu0 %v445
      %485 = vmatprep.subr.mxu0 0.0
      %486 = vmatpush2.msra.mxu0 0.0
      %487 = vmatprep.subr.mxu0 0.0
      %488 = vmatpush2.msra.mxu0 0.0
      %489 = vmatprep.subr.mxu0 0.0
      %490 = vmatpush2.msra.mxu0 0.0
      %491 = vmatprep.subr.mxu0 0.0
      %492 = vmatpush2.msra.mxu0 0.0
      %493 = vmatprep.subr.mxu0 0.0
      %494 = vmatpush2.msra.mxu0 0.0
      %495 = vmatprep.subr.mxu0 0.0
      %496 = vmatpush2.msra.mxu0 0.0
      %497 = vmatprep.subr.mxu0 0.0
      %498 = vmatpush2.msra.mxu0 0.0
      %499 = vmatprep.subr.mxu0 0.0
      %500 = vmatpush2.msra.mxu0 0.0
      %501 = vmatprep.subr.mxu0 0.0
      %502 = vmatpush2.msra.mxu0 0.0
      %503 = vmatprep.subr.mxu0 0.0
      %504 = vmatpush2.msra.mxu0 0.0
      %505 = vmatprep.subr.mxu0 0.0
      %506 = vmatpush2.msra.mxu0 0.0
      %507 = vmatprep.subr.mxu0 0.0
      %508 = vmatpush2.msra.mxu0 0.0
      %509 = vmatprep.subr.mxu0 0.0
      %510 = vmatpush2.msra.mxu0 0.0
      %511 = vmatprep.subr.mxu0 0.0
      %512 = vmatpush2.msra.mxu0 0.0
      %513 = vmatprep.subr.mxu0 0.0
      %514 = vmatpush2.msra.mxu0 0.0
      %515 = vmatprep.subr.mxu0 0.0
      %516 = vmatpush2.msra.mxu0 0.0
      %517 = vmatprep.mubr.f32.mxu0 0.0
      %518 = vmatmul.mubr.f32.gmra.mxu0 %v448
      %v519 = vpop.f32.mrf.mxu0
      %v520 = vadd.f32 0.0, %v519
      %v521 = vpop.f32.mrf.mxu0
      %522 = vmatprep.mubr.f32.mxu0 0.0
      %523 = vmatmul.mubr.f32.gmra.mxu0 %v451
      %v524 = vpop.f32.mrf.mxu0
      %v525 = vadd.f32 0.0, %v524
      %v526 = vpop.f32.mrf.mxu0
      %527 = vdwg.mxu0
      %v528 = vadd.f32 %v437, %v520
      %v529 = vadd.f32 %v438, %v525
      %v530 = vld [vmem:[%s2] sm:$0x1]
      %v532 = vlaneseq
      %v533 = vshrl.u32 %v532, 7
      %v534 = vsub.s32 0, %v533
      %v535 = vrot.slane %v530, %v534
      %v537 = vadd.f32 %v528, %v535
      %v538 = vadd.f32 %v529, %v535
      %539 = vst [vmem:[%s170] sm:$0xff] %v537
      %540 = vst [vmem:[%s170 + $0x8] sm:$0xff] %v538
      %p541 = scmp.lt.s32.totalorder %s14, 1
      %s542 = scalar_select %p541, %s14, 1
      %s543 = smul.addr %s542, 2
      %s544 = smul.addr %s543, 8
      %s545 = scalar_lea.vmem %s3, %s544
      // Predicated region
      $region33: #{_lambda_.5} parent=31 // pred_check
        %p546 = pneg %p100
      $region34: #{_lambda_.5} parent=31 // pred_check_branch
        %548 = sbr.rel (%p546) target = $region36
      $region35: #{_lambda_.5} parent=31 // pred_region
        _
      $region36: #{_lambda_.5} parent=31 // pred_fallthru
        _
    $region32: #{_lambda_.5} parent=5 // pred_fallthru
      _
    %p549 = scmp.le.s32.totalorder 2, %s9
    // Predicated region
    $region37: #{_lambda_.5} parent=5 // pred_check
      %p550 = pneg %p549
    $region38: #{_lambda_.5} parent=5 // pred_check_branch
      %552 = sbr.rel (%p550) target = $region40
    $region39: #{_lambda_.5} parent=5 // pred_region
      %s553 = ssub.s32 %s9, 2
      // Predicated region
      $region41: #{_lambda_.5} parent=39 // pred_check
        %p554 = pneg %p106
      $region42: #{_lambda_.5} parent=39 // pred_check_branch
        %556 = sbr.rel (%p554) target = $region44
      $region43: #{_lambda_.5} parent=39 // pred_region
        %p557 = scmp.lt.s32.totalorder %s15, 1
        %s558 = scalar_select %p557, %s15, 1
        %s559 = smul.addr %s558, 2
        %s560 = smul.addr %s559, 8
        %s561 = scalar_lea.vmem %s3, %s560
      $region44: #{_lambda_.5} parent=39 // pred_fallthru
        _
    $region40: #{_lambda_.5} parent=5 // pred_fallthru
      _
  $region6: #{_lambda_.5} parent=0 // loop_footer
    %s13 = sadd.s32 1, %s9
  $region7: #{_lambda_.5} parent=0 // loop_footer_branch
    %8 = sbr.rel target = $region3
  $region8: #{_lambda_.5} parent=0 // loop_exit
    _

// kernel: _lambda_.4
$region0: #{_lambda_.4}
  #allocation0 [shape = 'u32[]', space=smem, size = 0x4, offset = 0x4, fixed_abs, tag = 'smem constant byte address 0x4 - core index']
  #allocation1 [shape = 'u32[144,128]{1,0:T(1,128)}', space=vmem, size = 0x12000, scoped, tag = 'internal scratch']
  %s0 = inlined_call_operand.hbm [shape: f32[2,4,16,16], index: 0, kind: input, shape index: {}]
  %s1 = inlined_call_operand.hbm [shape: f32[4,16,128], index: 1, kind: input, shape index: {}]
  %s2 = inlined_call_operand.vmem [shape: f32[1,128], index: 2, kind: input, shape index: {}]
  %s3 = inlined_call_operand.vmem [shape: f32[2,16,128], index: 3, kind: output, shape index: {}]
  %s4 = sld [smem:[#allocation0]]
  $region53: #{_lambda_.4} parent=0
    _
  %s6 = ssub.s32 1, %s4
  %s7 = scalar_select 0, %s6, %s4
  $region1: #{_lambda_.4} parent=0
    #allocation2 [shape = 'u8[65536]{0}', space=vmem, size = 0x10000, scoped, tag = 'input window, operand 0']
    #allocation3 [shape = 's32[2]{0}', space=sflag, size = 0x8, scoped, tag = 'scoped memory for _lambda_.4']
    #allocation4 [shape = 'u8[32768]{0}', space=vmem, size = 0x8000, scoped, tag = 'input window, operand 1, single buffered']
    #allocation5 [shape = 's32[1]{0}', space=sflag, size = 0x4, scoped, tag = 'scoped memory for _lambda_.4']
    %8 = vsyncpa [#allocation3], 0
    %s9 = scalar_lea.sflag [#allocation3], 1
    %10 = vsyncpa %s9, 0
    %11 = vsyncpa [#allocation5], 0
    loop: start=0, step=1, limit=4
    $region2: #{_lambda_.4} parent=1 // loop_pre_header
      _
    $region3: #{_lambda_.4} parent=1 // loop_header
      %s13 = sphi 0, %s17
      %p14 = scmp.ge.s32.totalorder %s13, 4
      %s23 = sphi 0, %s25
      %s26 = sphi 0, %s23
      %s27 = sphi 0, %s26
      %s43 = sphi 0, %s27
      %s47 = sphi 0, %s47
      %s49 = sphi 0, %s47
      %s50 = sphi 0, %s49
      %s64 = sphi 0, %s50
      %s68 = sphi 0, %s68
      %s70 = sphi 0, %s68
      %s71 = sphi 0, %s70
      %s85 = sphi 0, %s71
      %s91 = sphi 0, %s93
      %s94 = sphi 0, %s91
      %s95 = sphi 0, %s94
      %s111 = sphi 0, %s95
    $region4: #{_lambda_.4} parent=1 // loop_header_branch
      %16 = sbr.rel (%p14) target = $region8
    $region5: #{_lambda_.4} parent=1 // loop_body
      %s18 = ssub.s32 %s13, 1
      %s19 = ssub.s32 %s13, 2
      %s20 = sadd.s32 %s13, 1
      %s21 = ssub.s32 %s13, %s20
      %p22 = scmp.eq.s32.totalorder %s21, 0
      %s24 = sadd.s32 %s23, 1
      %s25 = scalar_select %p22, %s23, %s24
      %p28 = pneg %p22
      %p29 = scmp.eq.s32.totalorder %s13, 1
      %p30 = por %p28, %p29
      %p31 = scmp.ne.s32.totalorder %s23, %s26
      %p32 = scmp.eq.s32.totalorder %s13, 0
      %p33 = por %p31, %p32
      %p34 = scmp.ne.s32.totalorder %s23, %s26
      %p35 = scmp.eq.s32.totalorder %s18, 1
      %p36 = por %p34, %p35
      %p37 = scmp.ne.s32.totalorder %s26, %s27
      %p38 = scmp.eq.s32.totalorder %s18, 0
      %p39 = por %p37, %p38
      %p40 = scmp.ne.s32.totalorder %s26, %s27
      %p41 = scmp.eq.s32.totalorder %s19, 1
      %p42 = por %p40, %p41
      %p44 = scmp.ne.s32.totalorder %s27, %s43
      %p45 = scmp.eq.s32.totalorder %s19, 0
      %p46 = por %p44, %p45
      %s48 = sadd.s32 %s47, 1
      %p51 = scmp.eq.s32.totalorder %s13, 1
      %p52 = scmp.ne.s32.totalorder %s47, %s49
      %p53 = scmp.eq.s32.totalorder %s13, 0
      %p54 = por %p52, %p53
      %p55 = scmp.ne.s32.totalorder %s47, %s49
      %p56 = scmp.eq.s32.totalorder %s18, 1
      %p57 = por %p55, %p56
      %p58 = scmp.ne.s32.totalorder %s49, %s50
      %p59 = scmp.eq.s32.totalorder %s18, 0
      %p60 = por %p58, %p59
      %p61 = scmp.ne.s32.totalorder %s49, %s50
      %p62 = scmp.eq.s32.totalorder %s19, 1
      %p63 = por %p61, %p62
      %p65 = scmp.ne.s32.totalorder %s50, %s64
      %p66 = scmp.eq.s32.totalorder %s19, 0
      %p67 = por %p65, %p66
      %s69 = sadd.s32 %s68, 1
      %p72 = scmp.eq.s32.totalorder %s13, 1
      %p73 = scmp.ne.s32.totalorder %s68, %s70
      %p74 = scmp.eq.s32.totalorder %s13, 0
      %p75 = por %p73, %p74
      %p76 = scmp.ne.s32.totalorder %s68, %s70
      %p77 = scmp.eq.s32.totalorder %s18, 1
      %p78 = por %p76, %p77
      %p79 = scmp.ne.s32.totalorder %s70, %s71
      %p80 = scmp.eq.s32.totalorder %s18, 0
      %p81 = por %p79, %p80
      %p82 = scmp.ne.s32.totalorder %s70, %s71
      %p83 = scmp.eq.s32.totalorder %s19, 1
      %p84 = por %p82, %p83
      %p86 = scmp.ne.s32.totalorder %s71, %s85
      %p87 = scmp.eq.s32.totalorder %s19, 0
      %p88 = por %p86, %p87
      %s89 = ssub.s32 %s13, %s20
      %p90 = scmp.eq.s32.totalorder %s89, 0
      %s92 = sadd.s32 %s91, 1
      %s93 = scalar_select %p90, %s91, %s92
      %p96 = pneg %p90
      %p97 = scmp.eq.s32.totalorder %s13, 1
      %p98 = por %p96, %p97
      %p99 = scmp.ne.s32.totalorder %s91, %s94
      %p100 = scmp.eq.s32.totalorder %s13, 0
      %p101 = por %p99, %p100
      %p102 = scmp.ne.s32.totalorder %s91, %s94
      %p103 = scmp.eq.s32.totalorder %s18, 1
      %p104 = por %p102, %p103
      %p105 = scmp.ne.s32.totalorder %s94, %s95
      %p106 = scmp.eq.s32.totalorder %s18, 0
      %p107 = por %p105, %p106
      %p108 = scmp.ne.s32.totalorder %s94, %s95
      %p109 = scmp.eq.s32.totalorder %s19, 1
      %p110 = por %p108, %p109
      %p112 = scmp.ne.s32.totalorder %s95, %s111
      %p113 = scmp.eq.s32.totalorder %s19, 0
      %p114 = por %p112, %p113
      %p115 = scmp.le.s32.totalorder 1, %s13
      %p116 = scmp.lt.s32.totalorder %s13, 3
      %p117 = pnand %p115, %p116
      %p118 = pneg %p117
      // Predicated region
      $region9: #{_lambda_.4} parent=5 // pred_check
        _
      $region10: #{_lambda_.4} parent=5 // pred_check_branch
        %120 = sbr.rel (%p117) target = $region12
      $region11: #{_lambda_.4} parent=5 // pred_region
        %s121 = ssub.s32 %s13, 1
        // Predicated region
        $region13: #{_lambda_.4} parent=11 // pred_check
          %p122 = pneg %p60
        $region14: #{_lambda_.4} parent=11 // pred_check_branch
          %124 = sbr.rel (%p122) target = $region16
        $region15: #{_lambda_.4} parent=11 // pred_region
          %s126 = ssub.s32 1024, 1024
          %127 = vsyncadd [#allocation5], %s126
          %s128 = sshll.u32 [#allocation4], 4
          %s129 = int_to_ptr.vmem [resolvable:$true] %s128
          %134 = dma.hbm_to_vmem [thread:$0]  %s1, 1024, %s129, [#allocation5], 128, 128, 8
        $region16: #{_lambda_.4} parent=11 // pred_fallthru
          _
        // Predicated region
        $region17: #{_lambda_.4} parent=11 // pred_check
          %p135 = pneg %p81
        $region18: #{_lambda_.4} parent=11 // pred_check_branch
          %137 = sbr.rel (%p135) target = $region20
        $region19: #{_lambda_.4} parent=11 // pred_region
          _
        $region20: #{_lambda_.4} parent=11 // pred_fallthru
          _
      $region12: #{_lambda_.4} parent=5 // pred_fallthru
        _
      %p138 = scmp.lt.s32.totalorder %s13, 2
      // Predicated region
      $region21: #{_lambda_.4} parent=5 // pred_check
        %p139 = pneg %p138
      $region22: #{_lambda_.4} parent=5 // pred_check_branch
        %141 = sbr.rel (%p139) target = $region24
      $region23: #{_lambda_.4} parent=5 // pred_region
        // Predicated region
        $region25: #{_lambda_.4} parent=23 // pred_check
          %p142 = pneg %p33
        $region26: #{_lambda_.4} parent=23 // pred_check_branch
          %144 = sbr.rel (%p142) target = $region28
        $region27: #{_lambda_.4} parent=23 // pred_region
          %s145 = sand.u32 %s23, 1
          %s146 = scalar_lea.sflag [#allocation3], %s145
          %s147 = sand.u32 %s23, 1
          %s148 = smul.addr %s147, 64
          %s149 = scalar_lea.vmem [#allocation2], %s148
          %s151 = ssub.s32 1024, 1024
          %152 = vsyncadd %s146, %s151
          %s153 = smul.addr %s13, 8
          %s154 = smul.addr %s153, 128
          %s155 = scalar_lea.hbm %s0, %s154
          %s156 = sshll.u32 %s149, 4
          %s157 = int_to_ptr.vmem [resolvable:$true] %s156
          %162 = dma.hbm_to_vmem [thread:$0]  %s155, 1024, %s157, %s146, 128, 128, 8
        $region28: #{_lambda_.4} parent=23 // pred_fallthru
          _
      $region24: #{_lambda_.4} parent=5 // pred_fallthru
        _
      %p163 = scmp.le.s32.totalorder 1, %s13
      %p164 = scmp.lt.s32.totalorder %s13, 3
      %p165 = pnand %p163, %p164
      %p166 = pneg %p165
      // Predicated region
      $region29: #{_lambda_.4} parent=5 // pred_check
        _
      $region30: #{_lambda_.4} parent=5 // pred_check_branch
        %168 = sbr.rel (%p165) target = $region32
      $region31: #{_lambda_.4} parent=5 // pred_region
        %s169 = ssub.s32 %s13, 1
        %s170 = sand.u32 %s26, 1
        %s171 = scalar_lea.sflag [#allocation3], %s170
        %s172 = sand.u32 %s26, 1
        %s173 = smul.addr %s172, 64
        %s174 = scalar_lea.vmem [#allocation2], %s173
        // Predicated region
        $region33: #{_lambda_.4} parent=31 // pred_check
          %p175 = pneg %p39
        $region34: #{_lambda_.4} parent=31 // pred_check_branch
          %177 = sbr.rel (%p175) target = $region36
        $region35: #{_lambda_.4} parent=31 // pred_region
          %178 = dma.done %s171, 1024
        $region36: #{_lambda_.4} parent=31 // pred_fallthru
          _
        // Predicated region
        $region37: #{_lambda_.4} parent=31 // pred_check
          %p179 = pneg %p60
        $region38: #{_lambda_.4} parent=31 // pred_check_branch
          %181 = sbr.rel (%p179) target = $region40
        $region39: #{_lambda_.4} parent=31 // pred_region
          %182 = dma.done [#allocation5], 1024
        $region40: #{_lambda_.4} parent=31 // pred_fallthru
          _
        %s183 = sand.u32 %s26, 1
        %s184 = scalar_lea.sflag [#allocation3], %s183
        %s185 = sand.u32 %s26, 1
        %s186 = smul.addr %s185, 64
        %s187 = scalar_lea.vmem [#allocation2], %s186
        %p188 = pneg %p39
        %p189 = pneg %p36
        %p190 = pneg %p60
        %p191 = pneg %p57
        %p192 = pneg %p81
        %p193 = pneg %p78
        %p194 = pneg %p107
        %p195 = pneg %p104
        %p196 = scmp.lt.s32.totalorder %s18, 1
        %s197 = scalar_select %p196, %s18, 1
        %s198 = smul.addr %s197, 2
        %s199 = smul.addr %s198, 8
        %s200 = scalar_lea.vmem %s3, %s199
        %p201 = scmp.lt.s32.totalorder %s18, 1
        %s202 = scalar_select %p201, %s18, 1
        %s203 = smul.addr %s202, 2
        %s204 = smul.addr %s203, 8
        %s205 = scalar_lea.vmem %s3, %s204
        %v206 = vld [vmem:[%s174] sm:$0xff]
        %v207 = vld [vmem:[%s174 + $0x8] sm:$0xff]
        %v208 = vmax.f32 %v206, 0.0
        %v209 = vmax.f32 %v207, 0.0
        %v210 = vld [vmem:[#allocation4] sm:$0xff]
        %v211 = vld [vmem:[#allocation4 + $0x8] sm:$0xff]
        %s212 = scalar_lea.vmem %s174, 16 [#allocation2]
        %v213 = vld [vmem:[%s212] sm:$0xff]
        %v214 = vld [vmem:[%s212 + $0x8] sm:$0xff]
        %v215 = vmax.f32 %v213, 0.0
        %v216 = vmax.f32 %v214, 0.0
        %s217 = scalar_lea.vmem [#allocation4], 16
        %v218 = vld [vmem:[%s217] sm:$0xff]
        %v219 = vld [vmem:[%s217 + $0x8] sm:$0xff]
        %vm220 = vcmask 130048
        %v222 = vsel %vm220, %v215, 0
        %v225 = vsel %vm220, %v216, 0
        %227 = vmatprep.subr.mxu0 0.0
        %228 = vmatpush1.msra.mxu0 0.0
        %229 = vmatprep.subr.mxu0 0.0
        %230 = vmatpush1.msra.mxu0 0.0
        %231 = vmatprep.subr.mxu0 0.0
        %232 = vmatpush1.msra.mxu0 0.0
        %233 = vmatprep.subr.mxu0 0.0
        %234 = vmatpush1.msra.mxu0 0.0
        %235 = vmatprep.subr.mxu0 0.0
        %236 = vmatpush1.msra.mxu0 0.0
        %237 = vmatprep.subr.mxu0 0.0
        %238 = vmatpush1.msra.mxu0 0.0
        %239 = vmatprep.subr.mxu0 0.0
        %240 = vmatpush1.msra.mxu0 0.0
        %241 = vmatprep.subr.mxu0 0.0
        %242 = vmatpush1.msra.mxu0 0.0
        %243 = vmatprep.subr.mxu0 0.0
        %244 = vmatpush1.msra.mxu0 0.0
        %245 = vmatprep.subr.mxu0 0.0
        %246 = vmatpush1.msra.mxu0 0.0
        %247 = vmatprep.subr.mxu0 0.0
        %248 = vmatpush1.msra.mxu0 0.0
        %249 = vmatprep.subr.mxu0 0.0
        %250 = vmatpush1.msra.mxu0 0.0
        %251 = vmatprep.subr.mxu0 0.0
        %252 = vmatpush1.msra.mxu0 0.0
        %253 = vmatprep.subr.mxu0 0.0
        %254 = vmatpush1.msra.mxu0 0.0
        %255 = vmatprep.subr.mxu0 0.0
        %256 = vmatpush1.msra.mxu0 %v219
        %257 = vmatprep.subr.mxu0 0.0
        %258 = vmatpush1.msra.mxu0 %v218
        %259 = vmatprep.subr.mxu0 0.0
        %260 = vmatpush2.msra.mxu0 0.0
        %261 = vmatprep.subr.mxu0 0.0
        %262 = vmatpush2.msra.mxu0 0.0
        %263 = vmatprep.subr.mxu0 0.0
        %264 = vmatpush2.msra.mxu0 0.0
        %265 = vmatprep.subr.mxu0 0.0
        %266 = vmatpush2.msra.mxu0 0.0
        %267 = vmatprep.subr.mxu0 0.0
        %268 = vmatpush2.msra.mxu0 0.0
        %269 = vmatprep.subr.mxu0 0.0
        %270 = vmatpush2.msra.mxu0 0.0
        %271 = vmatprep.subr.mxu0 0.0
        %272 = vmatpush2.msra.mxu0 0.0
        %273 = vmatprep.subr.mxu0 0.0
        %274 = vmatpush2.msra.mxu0 0.0
        %275 = vmatprep.subr.mxu0 0.0
        %276 = vmatpush2.msra.mxu0 0.0
        %277 = vmatprep.subr.mxu0 0.0
        %278 = vmatpush2.msra.mxu0 0.0
        %279 = vmatprep.subr.mxu0 0.0
        %280 = vmatpush2.msra.mxu0 0.0
        %281 = vmatprep.subr.mxu0 0.0
        %282 = vmatpush2.msra.mxu0 0.0
        %283 = vmatprep.subr.mxu0 0.0
        %284 = vmatpush2.msra.mxu0 0.0
        %285 = vmatprep.subr.mxu0 0.0
        %286 = vmatpush2.msra.mxu0 0.0
        %287 = vmatprep.subr.mxu0 0.0
        %288 = vmatpush2.msra.mxu0 0.0
        %289 = vmatprep.subr.mxu0 0.0
        %290 = vmatpush2.msra.mxu0 0.0
        %291 = vmatprep.mubr.f32.mxu0 0.0
        %292 = vmatmul.mubr.f32.gmra.mxu0 %v222
        %v293 = vpop.f32.mrf.mxu0
        %v294 = vadd.f32 0.0, %v293
        %v295 = vpop.f32.mrf.mxu0
        %296 = vmatprep.mubr.f32.mxu0 0.0
        %297 = vmatmul.mubr.f32.gmra.mxu0 %v225
        %v298 = vpop.f32.mrf.mxu0
        %v299 = vadd.f32 0.0, %v298
        %v300 = vpop.f32.mrf.mxu0
        %301 = vdwg.mxu0
        %v303 = vsel %vm220, %v208, 0
        %v306 = vsel %vm220, %v209, 0
        %308 = vmatprep.subr.mxu0 0.0
        %309 = vmatpush1.msra.mxu0 0.0
        %310 = vmatprep.subr.mxu0 0.0
        %311 = vmatpush1.msra.mxu0 0.0
        %312 = vmatprep.subr.mxu0 0.0
        %313 = vmatpush1.msra.mxu0 0.0
        %314 = vmatprep.subr.mxu0 0.0
        %315 = vmatpush1.msra.mxu0 0.0
        %316 = vmatprep.subr.mxu0 0.0
        %317 = vmatpush1.msra.mxu0 0.0
        %318 = vmatprep.subr.mxu0 0.0
        %319 = vmatpush1.msra.mxu0 0.0
        %320 = vmatprep.subr.mxu0 0.0
        %321 = vmatpush1.msra.mxu0 0.0
        %322 = vmatprep.subr.mxu0 0.0
        %323 = vmatpush1.msra.mxu0 0.0
        %324 = vmatprep.subr.mxu0 0.0
        %325 = vmatpush1.msra.mxu0 0.0
        %326 = vmatprep.subr.mxu0 0.0
        %327 = vmatpush1.msra.mxu0 0.0
        %328 = vmatprep.subr.mxu0 0.0
        %329 = vmatpush1.msra.mxu0 0.0
        %330 = vmatprep.subr.mxu0 0.0
        %331 = vmatpush1.msra.mxu0 0.0
        %332 = vmatprep.subr.mxu0 0.0
        %333 = vmatpush1.msra.mxu0 0.0
        %334 = vmatprep.subr.mxu0 0.0
        %335 = vmatpush1.msra.mxu0 0.0
        %336 = vmatprep.subr.mxu0 0.0
        %337 = vmatpush1.msra.mxu0 %v211
        %338 = vmatprep.subr.mxu0 0.0
        %339 = vmatpush1.msra.mxu0 %v210
        %340 = vmatprep.subr.mxu0 0.0
        %341 = vmatpush2.msra.mxu0 0.0
        %342 = vmatprep.subr.mxu0 0.0
        %343 = vmatpush2.msra.mxu0 0.0
        %344 = vmatprep.subr.mxu0 0.0
        %345 = vmatpush2.msra.mxu0 0.0
        %346 = vmatprep.subr.mxu0 0.0
        %347 = vmatpush2.msra.mxu0 0.0
        %348 = vmatprep.subr.mxu0 0.0
        %349 = vmatpush2.msra.mxu0 0.0
        %350 = vmatprep.subr.mxu0 0.0
        %351 = vmatpush2.msra.mxu0 0.0
        %352 = vmatprep.subr.mxu0 0.0
        %353 = vmatpush2.msra.mxu0 0.0
        %354 = vmatprep.subr.mxu0 0.0
        %355 = vmatpush2.msra.mxu0 0.0
        %356 = vmatprep.subr.mxu0 0.0
        %357 = vmatpush2.msra.mxu0 0.0
        %358 = vmatprep.subr.mxu0 0.0
        %359 = vmatpush2.msra.mxu0 0.0
        %360 = vmatprep.subr.mxu0 0.0
        %361 = vmatpush2.msra.mxu0 0.0
        %362 = vmatprep.subr.mxu0 0.0
        %363 = vmatpush2.msra.mxu0 0.0
        %364 = vmatprep.subr.mxu0 0.0
        %365 = vmatpush2.msra.mxu0 0.0
        %366 = vmatprep.subr.mxu0 0.0
        %367 = vmatpush2.msra.mxu0 0.0
        %368 = vmatprep.subr.mxu0 0.0
        %369 = vmatpush2.msra.mxu0 0.0
        %370 = vmatprep.subr.mxu0 0.0
        %371 = vmatpush2.msra.mxu0 0.0
        %372 = vmatprep.mubr.f32.mxu0 0.0
        %373 = vmatmul.mubr.f32.gmra.mxu0 %v303
        %v374 = vpop.f32.mrf.mxu0
        %v375 = vadd.f32 %v294, %v374
        %v376 = vpop.f32.mrf.mxu0
        %377 = vmatprep.mubr.f32.mxu0 0.0
        %378 = vmatmul.mubr.f32.gmra.mxu0 %v306
        %v379 = vpop.f32.mrf.mxu0
        %v380 = vadd.f32 %v299, %v379
        %v381 = vpop.f32.mrf.mxu0
        %382 = vdwg.mxu0
        %s383 = scalar_lea.vmem %s174, 32 [#allocation2]
        %v384 = vld [vmem:[%s383] sm:$0xff]
        %v385 = vld [vmem:[%s383 + $0x8] sm:$0xff]
        %v386 = vmax.f32 %v384, 0.0
        %v387 = vmax.f32 %v385, 0.0
        %s388 = scalar_lea.vmem [#allocation4], 32
        %v389 = vld [vmem:[%s388] sm:$0xff]
        %v390 = vld [vmem:[%s388 + $0x8] sm:$0xff]
        %v392 = vsel %vm220, %v386, 0
        %v395 = vsel %vm220, %v387, 0
        %397 = vmatprep.subr.mxu0 0.0
        %398 = vmatpush1.msra.mxu0 0.0
        %399 = vmatprep.subr.mxu0 0.0
        %400 = vmatpush1.msra.mxu0 0.0
        %401 = vmatprep.subr.mxu0 0.0
        %402 = vmatpush1.msra.mxu0 0.0
        %403 = vmatprep.subr.mxu0 0.0
        %404 = vmatpush1.msra.mxu0 0.0
        %405 = vmatprep.subr.mxu0 0.0
        %406 = vmatpush1.msra.mxu0 0.0
        %407 = vmatprep.subr.mxu0 0.0
        %408 = vmatpush1.msra.mxu0 0.0
        %409 = vmatprep.subr.mxu0 0.0
        %410 = vmatpush1.msra.mxu0 0.0
        %411 = vmatprep.subr.mxu0 0.0
        %412 = vmatpush1.msra.mxu0 0.0
        %413 = vmatprep.subr.mxu0 0.0
        %414 = vmatpush1.msra.mxu0 0.0
        %415 = vmatprep.subr.mxu0 0.0
        %416 = vmatpush1.msra.mxu0 0.0
        %417 = vmatprep.subr.mxu0 0.0
        %418 = vmatpush1.msra.mxu0 0.0
        %419 = vmatprep.subr.mxu0 0.0
        %420 = vmatpush1.msra.mxu0 0.0
        %421 = vmatprep.subr.mxu0 0.0
        %422 = vmatpush1.msra.mxu0 0.0
        %423 = vmatprep.subr.mxu0 0.0
        %424 = vmatpush1.msra.mxu0 0.0
        %425 = vmatprep.subr.mxu0 0.0
        %426 = vmatpush1.msra.mxu0 %v390
        %427 = vmatprep.subr.mxu0 0.0
        %428 = vmatpush1.msra.mxu0 %v389
        %429 = vmatprep.subr.mxu0 0.0
        %430 = vmatpush2.msra.mxu0 0.0
        %431 = vmatprep.subr.mxu0 0.0
        %432 = vmatpush2.msra.mxu0 0.0
        %433 = vmatprep.subr.mxu0 0.0
        %434 = vmatpush2.msra.mxu0 0.0
        %435 = vmatprep.subr.mxu0 0.0
        %436 = vmatpush2.msra.mxu0 0.0
        %437 = vmatprep.subr.mxu0 0.0
        %438 = vmatpush2.msra.mxu0 0.0
        %439 = vmatprep.subr.mxu0 0.0
        %440 = vmatpush2.msra.mxu0 0.0
        %441 = vmatprep.subr.mxu0 0.0
        %442 = vmatpush2.msra.mxu0 0.0
        %443 = vmatprep.subr.mxu0 0.0
        %444 = vmatpush2.msra.mxu0 0.0
        %445 = vmatprep.subr.mxu0 0.0
        %446 = vmatpush2.msra.mxu0 0.0
        %447 = vmatprep.subr.mxu0 0.0
        %448 = vmatpush2.msra.mxu0 0.0
        %449 = vmatprep.subr.mxu0 0.0
        %450 = vmatpush2.msra.mxu0 0.0
        %451 = vmatprep.subr.mxu0 0.0
        %452 = vmatpush2.msra.mxu0 0.0
        %453 = vmatprep.subr.mxu0 0.0
        %454 = vmatpush2.msra.mxu0 0.0
        %455 = vmatprep.subr.mxu0 0.0
        %456 = vmatpush2.msra.mxu0 0.0
        %457 = vmatprep.subr.mxu0 0.0
        %458 = vmatpush2.msra.mxu0 0.0
        %459 = vmatprep.subr.mxu0 0.0
        %460 = vmatpush2.msra.mxu0 0.0
        %461 = vmatprep.mubr.f32.mxu0 0.0
        %462 = vmatmul.mubr.f32.gmra.mxu0 %v392
        %v463 = vpop.f32.mrf.mxu0
        %v464 = vadd.f32 0.0, %v463
        %v465 = vpop.f32.mrf.mxu0
        %466 = vmatprep.mubr.f32.mxu0 0.0
        %467 = vmatmul.mubr.f32.gmra.mxu0 %v395
        %v468 = vpop.f32.mrf.mxu0
        %v469 = vadd.f32 0.0, %v468
        %v470 = vpop.f32.mrf.mxu0
        %471 = vdwg.mxu0
        %v472 = vadd.f32 %v375, %v464
        %v473 = vadd.f32 %v380, %v469
        %s474 = scalar_lea.vmem %s174, 48 [#allocation2]
        %v475 = vld [vmem:[%s474] sm:$0xff]
        %v476 = vld [vmem:[%s474 + $0x8] sm:$0xff]
        %v477 = vmax.f32 %v475, 0.0
        %v478 = vmax.f32 %v476, 0.0
        %s479 = scalar_lea.vmem [#allocation4], 48
        %v480 = vld [vmem:[%s479] sm:$0xff]
        %v481 = vld [vmem:[%s479 + $0x8] sm:$0xff]
        %v483 = vsel %vm220, %v477, 0
        %v486 = vsel %vm220, %v478, 0
        %488 = vmatprep.subr.mxu0 0.0
        %489 = vmatpush1.msra.mxu0 0.0
        %490 = vmatprep.subr.mxu0 0.0
        %491 = vmatpush1.msra.mxu0 0.0
        %492 = vmatprep.subr.mxu0 0.0
        %493 = vmatpush1.msra.mxu0 0.0
        %494 = vmatprep.subr.mxu0 0.0
        %495 = vmatpush1.msra.mxu0 0.0
        %496 = vmatprep.subr.mxu0 0.0
        %497 = vmatpush1.msra.mxu0 0.0
        %498 = vmatprep.subr.mxu0 0.0
        %499 = vmatpush1.msra.mxu0 0.0
        %500 = vmatprep.subr.mxu0 0.0
        %501 = vmatpush1.msra.mxu0 0.0
        %502 = vmatprep.subr.mxu0 0.0
        %503 = vmatpush1.msra.mxu0 0.0
        %504 = vmatprep.subr.mxu0 0.0
        %505 = vmatpush1.msra.mxu0 0.0
        %506 = vmatprep.subr.mxu0 0.0
        %507 = vmatpush1.msra.mxu0 0.0
        %508 = vmatprep.subr.mxu0 0.0
        %509 = vmatpush1.msra.mxu0 0.0
        %510 = vmatprep.subr.mxu0 0.0
        %511 = vmatpush1.msra.mxu0 0.0
        %512 = vmatprep.subr.mxu0 0.0
        %513 = vmatpush1.msra.mxu0 0.0
        %514 = vmatprep.subr.mxu0 0.0
        %515 = vmatpush1.msra.mxu0 0.0
        %516 = vmatprep.subr.mxu0 0.0
        %517 = vmatpush1.msra.mxu0 %v481
        %518 = vmatprep.subr.mxu0 0.0
        %519 = vmatpush1.msra.mxu0 %v480
        %520 = vmatprep.subr.mxu0 0.0
        %521 = vmatpush2.msra.mxu0 0.0
        %522 = vmatprep.subr.mxu0 0.0
        %523 = vmatpush2.msra.mxu0 0.0
        %524 = vmatprep.subr.mxu0 0.0
        %525 = vmatpush2.msra.mxu0 0.0
        %526 = vmatprep.subr.mxu0 0.0
        %527 = vmatpush2.msra.mxu0 0.0
        %528 = vmatprep.subr.mxu0 0.0
        %529 = vmatpush2.msra.mxu0 0.0
        %530 = vmatprep.subr.mxu0 0.0
        %531 = vmatpush2.msra.mxu0 0.0
        %532 = vmatprep.subr.mxu0 0.0
        %533 = vmatpush2.msra.mxu0 0.0
        %534 = vmatprep.subr.mxu0 0.0
        %535 = vmatpush2.msra.mxu0 0.0
        %536 = vmatprep.subr.mxu0 0.0
        %537 = vmatpush2.msra.mxu0 0.0
        %538 = vmatprep.subr.mxu0 0.0
        %539 = vmatpush2.msra.mxu0 0.0
        %540 = vmatprep.subr.mxu0 0.0
        %541 = vmatpush2.msra.mxu0 0.0
        %542 = vmatprep.subr.mxu0 0.0
        %543 = vmatpush2.msra.mxu0 0.0
        %544 = vmatprep.subr.mxu0 0.0
        %545 = vmatpush2.msra.mxu0 0.0
        %546 = vmatprep.subr.mxu0 0.0
        %547 = vmatpush2.msra.mxu0 0.0
        %548 = vmatprep.subr.mxu0 0.0
        %549 = vmatpush2.msra.mxu0 0.0
        %550 = vmatprep.subr.mxu0 0.0
        %551 = vmatpush2.msra.mxu0 0.0
        %552 = vmatprep.mubr.f32.mxu0 0.0
        %553 = vmatmul.mubr.f32.gmra.mxu0 %v483
        %v554 = vpop.f32.mrf.mxu0
        %v555 = vadd.f32 0.0, %v554
        %v556 = vpop.f32.mrf.mxu0
        %557 = vmatprep.mubr.f32.mxu0 0.0
        %558 = vmatmul.mubr.f32.gmra.mxu0 %v486
        %v559 = vpop.f32.mrf.mxu0
        %v560 = vadd.f32 0.0, %v559
        %v561 = vpop.f32.mrf.mxu0
        %562 = vdwg.mxu0
        %v563 = vadd.f32 %v472, %v555
        %v564 = vadd.f32 %v473, %v560
        %v565 = vld [vmem:[%s2] sm:$0x1]
        %v567 = vlaneseq
        %v568 = vshrl.u32 %v567, 7
        %v569 = vsub.s32 0, %v568
        %v570 = vrot.slane %v565, %v569
        %v572 = vadd.f32 %v563, %v570
        %v573 = vadd.f32 %v564, %v570
        %574 = vst [vmem:[%s205] sm:$0xff] %v572
        %575 = vst [vmem:[%s205 + $0x8] sm:$0xff] %v573
        %p576 = scmp.lt.s32.totalorder %s18, 1
        %s577 = scalar_select %p576, %s18, 1
        %s578 = smul.addr %s577, 2
        %s579 = smul.addr %s578, 8
        %s580 = scalar_lea.vmem %s3, %s579
        // Predicated region
        $region41: #{_lambda_.4} parent=31 // pred_check
          %p581 = pneg %p104
        $region42: #{_lambda_.4} parent=31 // pred_check_branch
          %583 = sbr.rel (%p581) target = $region44
        $region43: #{_lambda_.4} parent=31 // pred_region
          _
        $region44: #{_lambda_.4} parent=31 // pred_fallthru
          _
      $region32: #{_lambda_.4} parent=5 // pred_fallthru
        _
      %p584 = scmp.le.s32.totalorder 2, %s13
      // Predicated region
      $region45: #{_lambda_.4} parent=5 // pred_check
        %p585 = pneg %p584
      $region46: #{_lambda_.4} parent=5 // pred_check_branch
        %587 = sbr.rel (%p585) target = $region48
      $region47: #{_lambda_.4} parent=5 // pred_region
        %s588 = ssub.s32 %s13, 2
        // Predicated region
        $region49: #{_lambda_.4} parent=47 // pred_check
          %p589 = pneg %p110
        $region50: #{_lambda_.4} parent=47 // pred_check_branch
          %591 = sbr.rel (%p589) target = $region52
        $region51: #{_lambda_.4} parent=47 // pred_region
          %p592 = scmp.lt.s32.totalorder %s19, 1
          %s593 = scalar_select %p592, %s19, 1
          %s594 = smul.addr %s593, 2
          %s595 = smul.addr %s594, 8
          %s596 = scalar_lea.vmem %s3, %s595
        $region52: #{_lambda_.4} parent=47 // pred_fallthru
          _
      $region48: #{_lambda_.4} parent=5 // pred_fallthru
        _
    $region6: #{_lambda_.4} parent=1 // loop_footer
      %s17 = sadd.s32 1, %s13
    $region7: #{_lambda_.4} parent=1 // loop_footer_branch
      %12 = sbr.rel target = $region3
    $region8: #{_lambda_.4} parent=1 // loop_exit
      _
    %597 = vsyncpa [#allocation3], 1
    %s598 = scalar_lea.sflag [#allocation3], 1
    %599 = vsyncpa %s598, 1
    %600 = vsyncpa [#allocation5], 1

</llo_original>
